<compile_context>
chip_gen: v7x
topology: tpu7x:2x2x1
jax: 0.10.0
libtpu: 0.0.40
codegen_flags: <defaults>
</compile_context>

<pallas_src>
import functools

import jax
import jax.numpy as jnp
from jax.experimental import pallas as pl
from jax.experimental.pallas import tpu as pltpu


# ----------------------------------------------------------------------------
# Pallas kernel
# ----------------------------------------------------------------------------
def _lstm_cell(xg, h, c, whh, H):
    """One LSTM step. xg = x @ W_ih + b already precomputed for this step.

    Two full-vreg EUP passes (sigmoid over all gates, tanh over all gates),
    then the four H-wide gate segments are sliced out of the results.
    """
    gates = xg + jnp.dot(h, whh, preferred_element_type=jnp.float32)  # (B, 4H)
    s = jax.nn.sigmoid(gates)   # one EUP pass: holds i, f, o segments
    t = jnp.tanh(gates)         # one EUP pass: holds g segment
    i = s[:, 0 * H:1 * H]
    f = s[:, 1 * H:2 * H]
    g = t[:, 2 * H:3 * H]
    o = s[:, 3 * H:4 * H]
    c_new = f * c + i * g
    h_new = o * jnp.tanh(c_new)
    return h_new, c_new


def _coupler_kernel(B,
                    src_ref, tgt_ref,
                    enc_wih_ref, enc_whh_ref, enc_b_ref,
                    dec_wih_ref, dec_whh_ref, dec_b_ref,
                    fc_w_ref, fc_b_ref,
                    out_ref):
    """src_ref: (T_src*B, I_enc)  tgt_ref: (T_tgt*B, I_dec)
       out_ref: (T_tgt*B, O).  B is the sublane-padded batch (multiple of 8)."""
    H = enc_whh_ref.shape[0]
    T_src = src_ref.shape[0] // B
    T_tgt = tgt_ref.shape[0] // B

    # --- hoist input->gate projections out of the recurrence (one matmul each)
    xg_enc = (jnp.dot(src_ref[...], enc_wih_ref[...],
                      preferred_element_type=jnp.float32)
              + enc_b_ref[...])                       # (T_src*B, 4H)
    xg_dec = (jnp.dot(tgt_ref[...], dec_wih_ref[...],
                      preferred_element_type=jnp.float32)
              + dec_b_ref[...])                       # (T_tgt*B, 4H)

    enc_whh = enc_whh_ref[...]
    dec_whh = dec_whh_ref[...]

    # --- encoder recurrence (fully unrolled; h/c live in vregs) ---
    h = jnp.zeros((B, H), jnp.float32)
    c = jnp.zeros((B, H), jnp.float32)
    for t in range(T_src):
        h, c = _lstm_cell(xg_enc[t * B:(t + 1) * B, :], h, c, enc_whh, H)

    # --- decoder recurrence; collect h_t in vregs, project once at the end ---
    hs = []
    for t in range(T_tgt):
        h, c = _lstm_cell(xg_dec[t * B:(t + 1) * B, :], h, c, dec_whh, H)
        hs.append(h)
    hs = jnp.concatenate(hs, axis=0)                  # (T_tgt*B, H), in vregs

    # --- single batched FC projection + one bulk output store ---
    out_ref[...] = (jnp.dot(hs, fc_w_ref[...],
                            preferred_element_type=jnp.float32)
                    + fc_b_ref[...])


# ----------------------------------------------------------------------------
# Wrapper
# ----------------------------------------------------------------------------
@jax.jit
def coupler_forward(params, src, tgt):
    """coupler.forward(src, tgt):
         _, (h, c) = encoder(src)
         outputs, _ = decoder(tgt, h, c)
         return outputs
    src: (T_src, B, I_enc), tgt: (T_tgt, B, I_dec) -> (T_tgt, B, O)
    """
    T_src, B, I_enc = src.shape
    T_tgt, _, I_dec = tgt.shape
    H = params["enc_whh"].shape[0]
    O = params["fc_w"].shape[-1]

    # Pad the batch to a full 8-row sublane group so every per-step slice in
    # the recurrence is sublane-aligned (unmasked loads/stores, full MXU rows).
    # Padded rows are zeros and cannot contaminate real rows; they are sliced
    # off before returning.
    B_pad = ((B + 7) // 8) * 8
    if B_pad != B:
        src = jnp.pad(src, ((0, 0), (0, B_pad - B), (0, 0)))
        tgt = jnp.pad(tgt, ((0, 0), (0, B_pad - B), (0, 0)))

    # Flatten time*batch outside the kernel (free XLA reshape) so all matmuls
    # inside are plain 2-D and the kernel never reshapes.
    src_flat = src.reshape(T_src * B_pad, I_enc)
    tgt_flat = tgt.reshape(T_tgt * B_pad, I_dec)

    out_flat = pl.pallas_call(
        functools.partial(_coupler_kernel, B_pad),
        out_shape=jax.ShapeDtypeStruct((T_tgt * B_pad, O), jnp.float32),
        compiler_params=pltpu.CompilerParams(
            vmem_limit_bytes=32 * 1024 * 1024),
    )(src_flat, tgt_flat,
      params["enc_wih"], params["enc_whh"], params["enc_b"],
      params["dec_wih"], params["dec_whh"], params["dec_b"],
      params["fc_w"], params["fc_b"])

    return out_flat.reshape(T_tgt, B_pad, O)[:, :B, :]


# ----------------------------------------------------------------------------
# Pure-JAX reference (for correctness check)
# ----------------------------------------------------------------------------
def _lstm_scan_ref(x, wih, whh, b, h0, c0):
    H = h0.shape[-1]

    def step(carry, xt):
        h, c = carry
        gates = xt @ wih + h @ whh + b
        i = jax.nn.sigmoid(gates[:, :H])
        f = jax.nn.sigmoid(gates[:, H:2 * H])
        g = jnp.tanh(gates[:, 2 * H:3 * H])
        o = jax.nn.sigmoid(gates[:, 3 * H:])
        c = f * c + i * g
        h = o * jnp.tanh(c)
        return (h, c), h

    (hN, cN), hs = jax.lax.scan(step, (h0, c0), x)
    return hs, hN, cN


def coupler_forward_ref(params, src, tgt):
    B = src.shape[1]
    H = params["enc_whh"].shape[0]
    h0 = jnp.zeros((B, H), jnp.float32)
    c0 = jnp.zeros((B, H), jnp.float32)
    _, hN, cN = _lstm_scan_ref(src, params["enc_wih"], params["enc_whh"],
                               params["enc_b"], h0, c0)
    hs, _, _ = _lstm_scan_ref(tgt, params["dec_wih"], params["dec_whh"],
                              params["dec_b"], hN, cN)
    return hs @ params["fc_w"] + params["fc_b"]


# ----------------------------------------------------------------------------
# Main
# ----------------------------------------------------------------------------
if __name__ == "__main__":
    # Small shapes: batch=2, src_len=8, tgt_len=8, enc/dec input dim=16,
    # hidden=32, decoder output dim=16.
    B, T_SRC, T_TGT = 2, 8, 8
    I_ENC, I_DEC, H, O = 16, 16, 32, 16

    key = jax.random.PRNGKey(0)
    ks = jax.random.split(key, 10)
    scale = 1.0 / jnp.sqrt(H)

    def u(k, shape):
        return jax.random.uniform(k, shape, jnp.float32, -scale, scale)

    params = {
        # encoder LSTM (b = b_ih + b_hh folded together)
        "enc_wih": u(ks[0], (I_ENC, 4 * H)),
        "enc_whh": u(ks[1], (H, 4 * H)),
        "enc_b":   u(ks[2], (1, 4 * H)),
        # decoder LSTM
        "dec_wih": u(ks[3], (I_DEC, 4 * H)),
        "dec_whh": u(ks[4], (H, 4 * H)),
        "dec_b":   u(ks[5], (1, 4 * H)),
        # decoder output projection
        "fc_w":    u(ks[6], (H, O)),
        "fc_b":    u(ks[7], (1, O)),
    }
    # NOTE: on v6e/v7x the MXU operands could be cast to bf16 (f32 accumulation)
    # for VMEM/bandwidth savings; kept fp32 here so the 1e-5 check against the
    # fp32 reference holds.

    src = jax.random.normal(ks[8], (T_SRC, B, I_ENC), jnp.float32)
    tgt = jax.random.normal(ks[9], (T_TGT, B, I_DEC), jnp.float32)

    out = coupler_forward(params, src, tgt)
    jax.block_until_ready(out)
    assert out.shape == (T_TGT, B, O), out.shape

    ref = coupler_forward_ref(params, src, tgt)
    assert jnp.allclose(out, ref, rtol=1e-5, atol=1e-5), \
        float(jnp.max(jnp.abs(out - ref)))

    print("KERNEL_OK")
</pallas_src>

<mosaic_0001>
module attributes {stable_mosaic.version = 11 : i64} {
  func.func @_coupler_kernel(%arg0: memref<64x16xf32, #tpu.memory_space<vmem>>, %arg1: memref<64x16xf32, #tpu.memory_space<vmem>>, %arg2: memref<16x128xf32, #tpu.memory_space<vmem>>, %arg3: memref<32x128xf32, #tpu.memory_space<vmem>>, %arg4: memref<1x128xf32, #tpu.memory_space<vmem>>, %arg5: memref<16x128xf32, #tpu.memory_space<vmem>>, %arg6: memref<32x128xf32, #tpu.memory_space<vmem>>, %arg7: memref<1x128xf32, #tpu.memory_space<vmem>>, %arg8: memref<32x16xf32, #tpu.memory_space<vmem>>, %arg9: memref<1x16xf32, #tpu.memory_space<vmem>>, %arg10: memref<64x16xf32, #tpu.memory_space<vmem>>) attributes {dimension_semantics = [], scalar_prefetch = 0 : i64, scratch_operands = 0 : i64, tpu.core_type = #tpu.core_type<tc>} {
    %c0 = arith.constant 0 : index
    %c0_0 = arith.constant 0 : index
    %0 = vector.load %arg0[%c0, %c0_0] : memref<64x16xf32, #tpu.memory_space<vmem>>, vector<64x16xf32>
    %c0_1 = arith.constant 0 : index
    %c0_2 = arith.constant 0 : index
    %1 = vector.load %arg2[%c0_1, %c0_2] : memref<16x128xf32, #tpu.memory_space<vmem>>, vector<16x128xf32>
    %cst = arith.constant dense<0.000000e+00> : vector<64x128xf32>
    %2 = tpu.matmul %0, %1, %cst {dimension_numbers = #tpu.dot_dimension_numbers<[1], [0], [0], [1], [0, 0, 1, 1], [], []>} : vector<64x16xf32>, vector<16x128xf32>, vector<64x128xf32> -> vector<64x128xf32>
    %c0_3 = arith.constant 0 : index
    %c0_4 = arith.constant 0 : index
    %3 = vector.load %arg4[%c0_3, %c0_4] : memref<1x128xf32, #tpu.memory_space<vmem>>, vector<1x128xf32>
    %4 = vector.broadcast %3 : vector<1x128xf32> to vector<64x128xf32>
    %5 = arith.addf %2, %4 : vector<64x128xf32>
    %c0_5 = arith.constant 0 : index
    %c0_6 = arith.constant 0 : index
    %6 = vector.load %arg1[%c0_5, %c0_6] : memref<64x16xf32, #tpu.memory_space<vmem>>, vector<64x16xf32>
    %c0_7 = arith.constant 0 : index
    %c0_8 = arith.constant 0 : index
    %7 = vector.load %arg5[%c0_7, %c0_8] : memref<16x128xf32, #tpu.memory_space<vmem>>, vector<16x128xf32>
    %cst_9 = arith.constant dense<0.000000e+00> : vector<64x128xf32>
    %8 = tpu.matmul %6, %7, %cst_9 {dimension_numbers = #tpu.dot_dimension_numbers<[1], [0], [0], [1], [0, 0, 1, 1], [], []>} : vector<64x16xf32>, vector<16x128xf32>, vector<64x128xf32> -> vector<64x128xf32>
    %c0_10 = arith.constant 0 : index
    %c0_11 = arith.constant 0 : index
    %9 = vector.load %arg7[%c0_10, %c0_11] : memref<1x128xf32, #tpu.memory_space<vmem>>, vector<1x128xf32>
    %10 = vector.broadcast %9 : vector<1x128xf32> to vector<64x128xf32>
    %11 = arith.addf %8, %10 : vector<64x128xf32>
    %c0_12 = arith.constant 0 : index
    %c0_13 = arith.constant 0 : index
    %12 = vector.load %arg3[%c0_12, %c0_13] : memref<32x128xf32, #tpu.memory_space<vmem>>, vector<32x128xf32>
    %c0_14 = arith.constant 0 : index
    %c0_15 = arith.constant 0 : index
    %13 = vector.load %arg6[%c0_14, %c0_15] : memref<32x128xf32, #tpu.memory_space<vmem>>, vector<32x128xf32>
    %cst_16 = arith.constant 0.000000e+00 : f32
    %14 = vector.broadcast %cst_16 : f32 to vector<8x32xf32>
    %cst_17 = arith.constant 0.000000e+00 : f32
    %15 = vector.broadcast %cst_17 : f32 to vector<8x32xf32>
    %16 = vector.extract_strided_slice %5 {offsets = [0, 0], sizes = [8, 128], strides = [1, 1]} : vector<64x128xf32> to vector<8x128xf32>
    %cst_18 = arith.constant dense<0.000000e+00> : vector<8x128xf32>
    %17 = tpu.matmul %14, %12, %cst_18 {dimension_numbers = #tpu.dot_dimension_numbers<[1], [0], [0], [1], [0, 0, 1, 1], [], []>} : vector<8x32xf32>, vector<32x128xf32>, vector<8x128xf32> -> vector<8x128xf32>
    %18 = arith.addf %16, %17 : vector<8x128xf32>
    %19 = arith.negf %18 : vector<8x128xf32>
    %20 = math.exp %19 : vector<8x128xf32>
    %cst_19 = arith.constant 1.000000e+00 : f32
    %21 = vector.broadcast %cst_19 : f32 to vector<8x128xf32>
    %22 = arith.addf %21, %20 : vector<8x128xf32>
    %23 = arith.divf %21, %22 : vector<8x128xf32>
    %24 = math.tanh %18 : vector<8x128xf32>
    %25 = vector.extract_strided_slice %23 {offsets = [0, 0], sizes = [8, 32], strides = [1, 1]} : vector<8x128xf32> to vector<8x32xf32>
    %26 = vector.extract_strided_slice %23 {offsets = [0, 32], sizes = [8, 32], strides = [1, 1]} : vector<8x128xf32> to vector<8x32xf32>
    %27 = vector.extract_strided_slice %24 {offsets = [0, 64], sizes = [8, 32], strides = [1, 1]} : vector<8x128xf32> to vector<8x32xf32>
    %28 = vector.extract_strided_slice %23 {offsets = [0, 96], sizes = [8, 32], strides = [1, 1]} : vector<8x128xf32> to vector<8x32xf32>
    %29 = arith.mulf %26, %15 : vector<8x32xf32>
    %30 = arith.mulf %25, %27 : vector<8x32xf32>
    %31 = arith.addf %29, %30 : vector<8x32xf32>
    %32 = math.tanh %31 : vector<8x32xf32>
    %33 = arith.mulf %28, %32 : vector<8x32xf32>
    %34 = vector.extract_strided_slice %5 {offsets = [8, 0], sizes = [8, 128], strides = [1, 1]} : vector<64x128xf32> to vector<8x128xf32>
    %cst_20 = arith.constant dense<0.000000e+00> : vector<8x128xf32>
    %35 = tpu.matmul %33, %12, %cst_20 {dimension_numbers = #tpu.dot_dimension_numbers<[1], [0], [0], [1], [0, 0, 1, 1], [], []>} : vector<8x32xf32>, vector<32x128xf32>, vector<8x128xf32> -> vector<8x128xf32>
    %36 = arith.addf %34, %35 : vector<8x128xf32>
    %37 = arith.negf %36 : vector<8x128xf32>
    %38 = math.exp %37 : vector<8x128xf32>
    %cst_21 = arith.constant 1.000000e+00 : f32
    %39 = vector.broadcast %cst_21 : f32 to vector<8x128xf32>
    %40 = arith.addf %39, %38 : vector<8x128xf32>
    %41 = arith.divf %39, %40 : vector<8x128xf32>
    %42 = math.tanh %36 : vector<8x128xf32>
    %43 = vector.extract_strided_slice %41 {offsets = [0, 0], sizes = [8, 32], strides = [1, 1]} : vector<8x128xf32> to vector<8x32xf32>
    %44 = vector.extract_strided_slice %41 {offsets = [0, 32], sizes = [8, 32], strides = [1, 1]} : vector<8x128xf32> to vector<8x32xf32>
    %45 = vector.extract_strided_slice %42 {offsets = [0, 64], sizes = [8, 32], strides = [1, 1]} : vector<8x128xf32> to vector<8x32xf32>
    %46 = vector.extract_strided_slice %41 {offsets = [0, 96], sizes = [8, 32], strides = [1, 1]} : vector<8x128xf32> to vector<8x32xf32>
    %47 = arith.mulf %44, %31 : vector<8x32xf32>
    %48 = arith.mulf %43, %45 : vector<8x32xf32>
    %49 = arith.addf %47, %48 : vector<8x32xf32>
    %50 = math.tanh %49 : vector<8x32xf32>
    %51 = arith.mulf %46, %50 : vector<8x32xf32>
    %52 = vector.extract_strided_slice %5 {offsets = [16, 0], sizes = [8, 128], strides = [1, 1]} : vector<64x128xf32> to vector<8x128xf32>
    %cst_22 = arith.constant dense<0.000000e+00> : vector<8x128xf32>
    %53 = tpu.matmul %51, %12, %cst_22 {dimension_numbers = #tpu.dot_dimension_numbers<[1], [0], [0], [1], [0, 0, 1, 1], [], []>} : vector<8x32xf32>, vector<32x128xf32>, vector<8x128xf32> -> vector<8x128xf32>
    %54 = arith.addf %52, %53 : vector<8x128xf32>
    %55 = arith.negf %54 : vector<8x128xf32>
    %56 = math.exp %55 : vector<8x128xf32>
    %cst_23 = arith.constant 1.000000e+00 : f32
    %57 = vector.broadcast %cst_23 : f32 to vector<8x128xf32>
    %58 = arith.addf %57, %56 : vector<8x128xf32>
    %59 = arith.divf %57, %58 : vector<8x128xf32>
    %60 = math.tanh %54 : vector<8x128xf32>
    %61 = vector.extract_strided_slice %59 {offsets = [0, 0], sizes = [8, 32], strides = [1, 1]} : vector<8x128xf32> to vector<8x32xf32>
    %62 = vector.extract_strided_slice %59 {offsets = [0, 32], sizes = [8, 32], strides = [1, 1]} : vector<8x128xf32> to vector<8x32xf32>
    %63 = vector.extract_strided_slice %60 {offsets = [0, 64], sizes = [8, 32], strides = [1, 1]} : vector<8x128xf32> to vector<8x32xf32>
    %64 = vector.extract_strided_slice %59 {offsets = [0, 96], sizes = [8, 32], strides = [1, 1]} : vector<8x128xf32> to vector<8x32xf32>
    %65 = arith.mulf %62, %49 : vector<8x32xf32>
    %66 = arith.mulf %61, %63 : vector<8x32xf32>
    %67 = arith.addf %65, %66 : vector<8x32xf32>
    %68 = math.tanh %67 : vector<8x32xf32>
    %69 = arith.mulf %64, %68 : vector<8x32xf32>
    %70 = vector.extract_strided_slice %5 {offsets = [24, 0], sizes = [8, 128], strides = [1, 1]} : vector<64x128xf32> to vector<8x128xf32>
    %cst_24 = arith.constant dense<0.000000e+00> : vector<8x128xf32>
    %71 = tpu.matmul %69, %12, %cst_24 {dimension_numbers = #tpu.dot_dimension_numbers<[1], [0], [0], [1], [0, 0, 1, 1], [], []>} : vector<8x32xf32>, vector<32x128xf32>, vector<8x128xf32> -> vector<8x128xf32>
    %72 = arith.addf %70, %71 : vector<8x128xf32>
    %73 = arith.negf %72 : vector<8x128xf32>
    %74 = math.exp %73 : vector<8x128xf32>
    %cst_25 = arith.constant 1.000000e+00 : f32
    %75 = vector.broadcast %cst_25 : f32 to vector<8x128xf32>
    %76 = arith.addf %75, %74 : vector<8x128xf32>
    %77 = arith.divf %75, %76 : vector<8x128xf32>
    %78 = math.tanh %72 : vector<8x128xf32>
    %79 = vector.extract_strided_slice %77 {offsets = [0, 0], sizes = [8, 32], strides = [1, 1]} : vector<8x128xf32> to vector<8x32xf32>
    %80 = vector.extract_strided_slice %77 {offsets = [0, 32], sizes = [8, 32], strides = [1, 1]} : vector<8x128xf32> to vector<8x32xf32>
    %81 = vector.extract_strided_slice %78 {offsets = [0, 64], sizes = [8, 32], strides = [1, 1]} : vector<8x128xf32> to vector<8x32xf32>
    %82 = vector.extract_strided_slice %77 {offsets = [0, 96], sizes = [8, 32], strides = [1, 1]} : vector<8x128xf32> to vector<8x32xf32>
    %83 = arith.mulf %80, %67 : vector<8x32xf32>
    %84 = arith.mulf %79, %81 : vector<8x32xf32>
    %85 = arith.addf %83, %84 : vector<8x32xf32>
    %86 = math.tanh %85 : vector<8x32xf32>
    %87 = arith.mulf %82, %86 : vector<8x32xf32>
    %88 = vector.extract_strided_slice %5 {offsets = [32, 0], sizes = [8, 128], strides = [1, 1]} : vector<64x128xf32> to vector<8x128xf32>
    %cst_26 = arith.constant dense<0.000000e+00> : vector<8x128xf32>
    %89 = tpu.matmul %87, %12, %cst_26 {dimension_numbers = #tpu.dot_dimension_numbers<[1], [0], [0], [1], [0, 0, 1, 1], [], []>} : vector<8x32xf32>, vector<32x128xf32>, vector<8x128xf32> -> vector<8x128xf32>
    %90 = arith.addf %88, %89 : vector<8x128xf32>
    %91 = arith.negf %90 : vector<8x128xf32>
    %92 = math.exp %91 : vector<8x128xf32>
    %cst_27 = arith.constant 1.000000e+00 : f32
    %93 = vector.broadcast %cst_27 : f32 to vector<8x128xf32>
    %94 = arith.addf %93, %92 : vector<8x128xf32>
    %95 = arith.divf %93, %94 : vector<8x128xf32>
    %96 = math.tanh %90 : vector<8x128xf32>
    %97 = vector.extract_strided_slice %95 {offsets = [0, 0], sizes = [8, 32], strides = [1, 1]} : vector<8x128xf32> to vector<8x32xf32>
    %98 = vector.extract_strided_slice %95 {offsets = [0, 32], sizes = [8, 32], strides = [1, 1]} : vector<8x128xf32> to vector<8x32xf32>
    %99 = vector.extract_strided_slice %96 {offsets = [0, 64], sizes = [8, 32], strides = [1, 1]} : vector<8x128xf32> to vector<8x32xf32>
    %100 = vector.extract_strided_slice %95 {offsets = [0, 96], sizes = [8, 32], strides = [1, 1]} : vector<8x128xf32> to vector<8x32xf32>
    %101 = arith.mulf %98, %85 : vector<8x32xf32>
    %102 = arith.mulf %97, %99 : vector<8x32xf32>
    %103 = arith.addf %101, %102 : vector<8x32xf32>
    %104 = math.tanh %103 : vector<8x32xf32>
    %105 = arith.mulf %100, %104 : vector<8x32xf32>
    %106 = vector.extract_strided_slice %5 {offsets = [40, 0], sizes = [8, 128], strides = [1, 1]} : vector<64x128xf32> to vector<8x128xf32>
    %cst_28 = arith.constant dense<0.000000e+00> : vector<8x128xf32>
    %107 = tpu.matmul %105, %12, %cst_28 {dimension_numbers = #tpu.dot_dimension_numbers<[1], [0], [0], [1], [0, 0, 1, 1], [], []>} : vector<8x32xf32>, vector<32x128xf32>, vector<8x128xf32> -> vector<8x128xf32>
    %108 = arith.addf %106, %107 : vector<8x128xf32>
    %109 = arith.negf %108 : vector<8x128xf32>
    %110 = math.exp %109 : vector<8x128xf32>
    %cst_29 = arith.constant 1.000000e+00 : f32
    %111 = vector.broadcast %cst_29 : f32 to vector<8x128xf32>
    %112 = arith.addf %111, %110 : vector<8x128xf32>
    %113 = arith.divf %111, %112 : vector<8x128xf32>
    %114 = math.tanh %108 : vector<8x128xf32>
    %115 = vector.extract_strided_slice %113 {offsets = [0, 0], sizes = [8, 32], strides = [1, 1]} : vector<8x128xf32> to vector<8x32xf32>
    %116 = vector.extract_strided_slice %113 {offsets = [0, 32], sizes = [8, 32], strides = [1, 1]} : vector<8x128xf32> to vector<8x32xf32>
    %117 = vector.extract_strided_slice %114 {offsets = [0, 64], sizes = [8, 32], strides = [1, 1]} : vector<8x128xf32> to vector<8x32xf32>
    %118 = vector.extract_strided_slice %113 {offsets = [0, 96], sizes = [8, 32], strides = [1, 1]} : vector<8x128xf32> to vector<8x32xf32>
    %119 = arith.mulf %116, %103 : vector<8x32xf32>
    %120 = arith.mulf %115, %117 : vector<8x32xf32>
    %121 = arith.addf %119, %120 : vector<8x32xf32>
    %122 = math.tanh %121 : vector<8x32xf32>
    %123 = arith.mulf %118, %122 : vector<8x32xf32>
    %124 = vector.extract_strided_slice %5 {offsets = [48, 0], sizes = [8, 128], strides = [1, 1]} : vector<64x128xf32> to vector<8x128xf32>
    %cst_30 = arith.constant dense<0.000000e+00> : vector<8x128xf32>
    %125 = tpu.matmul %123, %12, %cst_30 {dimension_numbers = #tpu.dot_dimension_numbers<[1], [0], [0], [1], [0, 0, 1, 1], [], []>} : vector<8x32xf32>, vector<32x128xf32>, vector<8x128xf32> -> vector<8x128xf32>
    %126 = arith.addf %124, %125 : vector<8x128xf32>
    %127 = arith.negf %126 : vector<8x128xf32>
    %128 = math.exp %127 : vector<8x128xf32>
    %cst_31 = arith.constant 1.000000e+00 : f32
    %129 = vector.broadcast %cst_31 : f32 to vector<8x128xf32>
    %130 = arith.addf %129, %128 : vector<8x128xf32>
    %131 = arith.divf %129, %130 : vector<8x128xf32>
    %132 = math.tanh %126 : vector<8x128xf32>
    %133 = vector.extract_strided_slice %131 {offsets = [0, 0], sizes = [8, 32], strides = [1, 1]} : vector<8x128xf32> to vector<8x32xf32>
    %134 = vector.extract_strided_slice %131 {offsets = [0, 32], sizes = [8, 32], strides = [1, 1]} : vector<8x128xf32> to vector<8x32xf32>
    %135 = vector.extract_strided_slice %132 {offsets = [0, 64], sizes = [8, 32], strides = [1, 1]} : vector<8x128xf32> to vector<8x32xf32>
    %136 = vector.extract_strided_slice %131 {offsets = [0, 96], sizes = [8, 32], strides = [1, 1]} : vector<8x128xf32> to vector<8x32xf32>
    %137 = arith.mulf %134, %121 : vector<8x32xf32>
    %138 = arith.mulf %133, %135 : vector<8x32xf32>
    %139 = arith.addf %137, %138 : vector<8x32xf32>
    %140 = math.tanh %139 : vector<8x32xf32>
    %141 = arith.mulf %136, %140 : vector<8x32xf32>
    %142 = vector.extract_strided_slice %5 {offsets = [56, 0], sizes = [8, 128], strides = [1, 1]} : vector<64x128xf32> to vector<8x128xf32>
    %cst_32 = arith.constant dense<0.000000e+00> : vector<8x128xf32>
    %143 = tpu.matmul %141, %12, %cst_32 {dimension_numbers = #tpu.dot_dimension_numbers<[1], [0], [0], [1], [0, 0, 1, 1], [], []>} : vector<8x32xf32>, vector<32x128xf32>, vector<8x128xf32> -> vector<8x128xf32>
    %144 = arith.addf %142, %143 : vector<8x128xf32>
    %145 = arith.negf %144 : vector<8x128xf32>
    %146 = math.exp %145 : vector<8x128xf32>
    %cst_33 = arith.constant 1.000000e+00 : f32
    %147 = vector.broadcast %cst_33 : f32 to vector<8x128xf32>
    %148 = arith.addf %147, %146 : vector<8x128xf32>
    %149 = arith.divf %147, %148 : vector<8x128xf32>
    %150 = math.tanh %144 : vector<8x128xf32>
    %151 = vector.extract_strided_slice %149 {offsets = [0, 0], sizes = [8, 32], strides = [1, 1]} : vector<8x128xf32> to vector<8x32xf32>
    %152 = vector.extract_strided_slice %149 {offsets = [0, 32], sizes = [8, 32], strides = [1, 1]} : vector<8x128xf32> to vector<8x32xf32>
    %153 = vector.extract_strided_slice %150 {offsets = [0, 64], sizes = [8, 32], strides = [1, 1]} : vector<8x128xf32> to vector<8x32xf32>
    %154 = vector.extract_strided_slice %149 {offsets = [0, 96], sizes = [8, 32], strides = [1, 1]} : vector<8x128xf32> to vector<8x32xf32>
    %155 = arith.mulf %152, %139 : vector<8x32xf32>
    %156 = arith.mulf %151, %153 : vector<8x32xf32>
    %157 = arith.addf %155, %156 : vector<8x32xf32>
    %158 = math.tanh %157 : vector<8x32xf32>
    %159 = arith.mulf %154, %158 : vector<8x32xf32>
    %160 = vector.extract_strided_slice %11 {offsets = [0, 0], sizes = [8, 128], strides = [1, 1]} : vector<64x128xf32> to vector<8x128xf32>
    %cst_34 = arith.constant dense<0.000000e+00> : vector<8x128xf32>
    %161 = tpu.matmul %159, %13, %cst_34 {dimension_numbers = #tpu.dot_dimension_numbers<[1], [0], [0], [1], [0, 0, 1, 1], [], []>} : vector<8x32xf32>, vector<32x128xf32>, vector<8x128xf32> -> vector<8x128xf32>
    %162 = arith.addf %160, %161 : vector<8x128xf32>
    %163 = arith.negf %162 : vector<8x128xf32>
    %164 = math.exp %163 : vector<8x128xf32>
    %cst_35 = arith.constant 1.000000e+00 : f32
    %165 = vector.broadcast %cst_35 : f32 to vector<8x128xf32>
    %166 = arith.addf %165, %164 : vector<8x128xf32>
    %167 = arith.divf %165, %166 : vector<8x128xf32>
    %168 = math.tanh %162 : vector<8x128xf32>
    %169 = vector.extract_strided_slice %167 {offsets = [0, 0], sizes = [8, 32], strides = [1, 1]} : vector<8x128xf32> to vector<8x32xf32>
    %170 = vector.extract_strided_slice %167 {offsets = [0, 32], sizes = [8, 32], strides = [1, 1]} : vector<8x128xf32> to vector<8x32xf32>
    %171 = vector.extract_strided_slice %168 {offsets = [0, 64], sizes = [8, 32], strides = [1, 1]} : vector<8x128xf32> to vector<8x32xf32>
    %172 = vector.extract_strided_slice %167 {offsets = [0, 96], sizes = [8, 32], strides = [1, 1]} : vector<8x128xf32> to vector<8x32xf32>
    %173 = arith.mulf %170, %157 : vector<8x32xf32>
    %174 = arith.mulf %169, %171 : vector<8x32xf32>
    %175 = arith.addf %173, %174 : vector<8x32xf32>
    %176 = math.tanh %175 : vector<8x32xf32>
    %177 = arith.mulf %172, %176 : vector<8x32xf32>
    %178 = vector.extract_strided_slice %11 {offsets = [8, 0], sizes = [8, 128], strides = [1, 1]} : vector<64x128xf32> to vector<8x128xf32>
    %cst_36 = arith.constant dense<0.000000e+00> : vector<8x128xf32>
    %179 = tpu.matmul %177, %13, %cst_36 {dimension_numbers = #tpu.dot_dimension_numbers<[1], [0], [0], [1], [0, 0, 1, 1], [], []>} : vector<8x32xf32>, vector<32x128xf32>, vector<8x128xf32> -> vector<8x128xf32>
    %180 = arith.addf %178, %179 : vector<8x128xf32>
    %181 = arith.negf %180 : vector<8x128xf32>
    %182 = math.exp %181 : vector<8x128xf32>
    %cst_37 = arith.constant 1.000000e+00 : f32
    %183 = vector.broadcast %cst_37 : f32 to vector<8x128xf32>
    %184 = arith.addf %183, %182 : vector<8x128xf32>
    %185 = arith.divf %183, %184 : vector<8x128xf32>
    %186 = math.tanh %180 : vector<8x128xf32>
    %187 = vector.extract_strided_slice %185 {offsets = [0, 0], sizes = [8, 32], strides = [1, 1]} : vector<8x128xf32> to vector<8x32xf32>
    %188 = vector.extract_strided_slice %185 {offsets = [0, 32], sizes = [8, 32], strides = [1, 1]} : vector<8x128xf32> to vector<8x32xf32>
    %189 = vector.extract_strided_slice %186 {offsets = [0, 64], sizes = [8, 32], strides = [1, 1]} : vector<8x128xf32> to vector<8x32xf32>
    %190 = vector.extract_strided_slice %185 {offsets = [0, 96], sizes = [8, 32], strides = [1, 1]} : vector<8x128xf32> to vector<8x32xf32>
    %191 = arith.mulf %188, %175 : vector<8x32xf32>
    %192 = arith.mulf %187, %189 : vector<8x32xf32>
    %193 = arith.addf %191, %192 : vector<8x32xf32>
    %194 = math.tanh %193 : vector<8x32xf32>
    %195 = arith.mulf %190, %194 : vector<8x32xf32>
    %196 = vector.extract_strided_slice %11 {offsets = [16, 0], sizes = [8, 128], strides = [1, 1]} : vector<64x128xf32> to vector<8x128xf32>
    %cst_38 = arith.constant dense<0.000000e+00> : vector<8x128xf32>
    %197 = tpu.matmul %195, %13, %cst_38 {dimension_numbers = #tpu.dot_dimension_numbers<[1], [0], [0], [1], [0, 0, 1, 1], [], []>} : vector<8x32xf32>, vector<32x128xf32>, vector<8x128xf32> -> vector<8x128xf32>
    %198 = arith.addf %196, %197 : vector<8x128xf32>
    %199 = arith.negf %198 : vector<8x128xf32>
    %200 = math.exp %199 : vector<8x128xf32>
    %cst_39 = arith.constant 1.000000e+00 : f32
    %201 = vector.broadcast %cst_39 : f32 to vector<8x128xf32>
    %202 = arith.addf %201, %200 : vector<8x128xf32>
    %203 = arith.divf %201, %202 : vector<8x128xf32>
    %204 = math.tanh %198 : vector<8x128xf32>
    %205 = vector.extract_strided_slice %203 {offsets = [0, 0], sizes = [8, 32], strides = [1, 1]} : vector<8x128xf32> to vector<8x32xf32>
    %206 = vector.extract_strided_slice %203 {offsets = [0, 32], sizes = [8, 32], strides = [1, 1]} : vector<8x128xf32> to vector<8x32xf32>
    %207 = vector.extract_strided_slice %204 {offsets = [0, 64], sizes = [8, 32], strides = [1, 1]} : vector<8x128xf32> to vector<8x32xf32>
    %208 = vector.extract_strided_slice %203 {offsets = [0, 96], sizes = [8, 32], strides = [1, 1]} : vector<8x128xf32> to vector<8x32xf32>
    %209 = arith.mulf %206, %193 : vector<8x32xf32>
    %210 = arith.mulf %205, %207 : vector<8x32xf32>
    %211 = arith.addf %209, %210 : vector<8x32xf32>
    %212 = math.tanh %211 : vector<8x32xf32>
    %213 = arith.mulf %208, %212 : vector<8x32xf32>
    %214 = vector.extract_strided_slice %11 {offsets = [24, 0], sizes = [8, 128], strides = [1, 1]} : vector<64x128xf32> to vector<8x128xf32>
    %cst_40 = arith.constant dense<0.000000e+00> : vector<8x128xf32>
    %215 = tpu.matmul %213, %13, %cst_40 {dimension_numbers = #tpu.dot_dimension_numbers<[1], [0], [0], [1], [0, 0, 1, 1], [], []>} : vector<8x32xf32>, vector<32x128xf32>, vector<8x128xf32> -> vector<8x128xf32>
    %216 = arith.addf %214, %215 : vector<8x128xf32>
    %217 = arith.negf %216 : vector<8x128xf32>
    %218 = math.exp %217 : vector<8x128xf32>
    %cst_41 = arith.constant 1.000000e+00 : f32
    %219 = vector.broadcast %cst_41 : f32 to vector<8x128xf32>
    %220 = arith.addf %219, %218 : vector<8x128xf32>
    %221 = arith.divf %219, %220 : vector<8x128xf32>
    %222 = math.tanh %216 : vector<8x128xf32>
    %223 = vector.extract_strided_slice %221 {offsets = [0, 0], sizes = [8, 32], strides = [1, 1]} : vector<8x128xf32> to vector<8x32xf32>
    %224 = vector.extract_strided_slice %221 {offsets = [0, 32], sizes = [8, 32], strides = [1, 1]} : vector<8x128xf32> to vector<8x32xf32>
    %225 = vector.extract_strided_slice %222 {offsets = [0, 64], sizes = [8, 32], strides = [1, 1]} : vector<8x128xf32> to vector<8x32xf32>
    %226 = vector.extract_strided_slice %221 {offsets = [0, 96], sizes = [8, 32], strides = [1, 1]} : vector<8x128xf32> to vector<8x32xf32>
    %227 = arith.mulf %224, %211 : vector<8x32xf32>
    %228 = arith.mulf %223, %225 : vector<8x32xf32>
    %229 = arith.addf %227, %228 : vector<8x32xf32>
    %230 = math.tanh %229 : vector<8x32xf32>
    %231 = arith.mulf %226, %230 : vector<8x32xf32>
    %232 = vector.extract_strided_slice %11 {offsets = [32, 0], sizes = [8, 128], strides = [1, 1]} : vector<64x128xf32> to vector<8x128xf32>
    %cst_42 = arith.constant dense<0.000000e+00> : vector<8x128xf32>
    %233 = tpu.matmul %231, %13, %cst_42 {dimension_numbers = #tpu.dot_dimension_numbers<[1], [0], [0], [1], [0, 0, 1, 1], [], []>} : vector<8x32xf32>, vector<32x128xf32>, vector<8x128xf32> -> vector<8x128xf32>
    %234 = arith.addf %232, %233 : vector<8x128xf32>
    %235 = arith.negf %234 : vector<8x128xf32>
    %236 = math.exp %235 : vector<8x128xf32>
    %cst_43 = arith.constant 1.000000e+00 : f32
    %237 = vector.broadcast %cst_43 : f32 to vector<8x128xf32>
    %238 = arith.addf %237, %236 : vector<8x128xf32>
    %239 = arith.divf %237, %238 : vector<8x128xf32>
    %240 = math.tanh %234 : vector<8x128xf32>
    %241 = vector.extract_strided_slice %239 {offsets = [0, 0], sizes = [8, 32], strides = [1, 1]} : vector<8x128xf32> to vector<8x32xf32>
    %242 = vector.extract_strided_slice %239 {offsets = [0, 32], sizes = [8, 32], strides = [1, 1]} : vector<8x128xf32> to vector<8x32xf32>
    %243 = vector.extract_strided_slice %240 {offsets = [0, 64], sizes = [8, 32], strides = [1, 1]} : vector<8x128xf32> to vector<8x32xf32>
    %244 = vector.extract_strided_slice %239 {offsets = [0, 96], sizes = [8, 32], strides = [1, 1]} : vector<8x128xf32> to vector<8x32xf32>
    %245 = arith.mulf %242, %229 : vector<8x32xf32>
    %246 = arith.mulf %241, %243 : vector<8x32xf32>
    %247 = arith.addf %245, %246 : vector<8x32xf32>
    %248 = math.tanh %247 : vector<8x32xf32>
    %249 = arith.mulf %244, %248 : vector<8x32xf32>
    %250 = vector.extract_strided_slice %11 {offsets = [40, 0], sizes = [8, 128], strides = [1, 1]} : vector<64x128xf32> to vector<8x128xf32>
    %cst_44 = arith.constant dense<0.000000e+00> : vector<8x128xf32>
    %251 = tpu.matmul %249, %13, %cst_44 {dimension_numbers = #tpu.dot_dimension_numbers<[1], [0], [0], [1], [0, 0, 1, 1], [], []>} : vector<8x32xf32>, vector<32x128xf32>, vector<8x128xf32> -> vector<8x128xf32>
    %252 = arith.addf %250, %251 : vector<8x128xf32>
    %253 = arith.negf %252 : vector<8x128xf32>
    %254 = math.exp %253 : vector<8x128xf32>
    %cst_45 = arith.constant 1.000000e+00 : f32
    %255 = vector.broadcast %cst_45 : f32 to vector<8x128xf32>
    %256 = arith.addf %255, %254 : vector<8x128xf32>
    %257 = arith.divf %255, %256 : vector<8x128xf32>
    %258 = math.tanh %252 : vector<8x128xf32>
    %259 = vector.extract_strided_slice %257 {offsets = [0, 0], sizes = [8, 32], strides = [1, 1]} : vector<8x128xf32> to vector<8x32xf32>
    %260 = vector.extract_strided_slice %257 {offsets = [0, 32], sizes = [8, 32], strides = [1, 1]} : vector<8x128xf32> to vector<8x32xf32>
    %261 = vector.extract_strided_slice %258 {offsets = [0, 64], sizes = [8, 32], strides = [1, 1]} : vector<8x128xf32> to vector<8x32xf32>
    %262 = vector.extract_strided_slice %257 {offsets = [0, 96], sizes = [8, 32], strides = [1, 1]} : vector<8x128xf32> to vector<8x32xf32>
    %263 = arith.mulf %260, %247 : vector<8x32xf32>
    %264 = arith.mulf %259, %261 : vector<8x32xf32>
    %265 = arith.addf %263, %264 : vector<8x32xf32>
    %266 = math.tanh %265 : vector<8x32xf32>
    %267 = arith.mulf %262, %266 : vector<8x32xf32>
    %268 = vector.extract_strided_slice %11 {offsets = [48, 0], sizes = [8, 128], strides = [1, 1]} : vector<64x128xf32> to vector<8x128xf32>
    %cst_46 = arith.constant dense<0.000000e+00> : vector<8x128xf32>
    %269 = tpu.matmul %267, %13, %cst_46 {dimension_numbers = #tpu.dot_dimension_numbers<[1], [0], [0], [1], [0, 0, 1, 1], [], []>} : vector<8x32xf32>, vector<32x128xf32>, vector<8x128xf32> -> vector<8x128xf32>
    %270 = arith.addf %268, %269 : vector<8x128xf32>
    %271 = arith.negf %270 : vector<8x128xf32>
    %272 = math.exp %271 : vector<8x128xf32>
    %cst_47 = arith.constant 1.000000e+00 : f32
    %273 = vector.broadcast %cst_47 : f32 to vector<8x128xf32>
    %274 = arith.addf %273, %272 : vector<8x128xf32>
    %275 = arith.divf %273, %274 : vector<8x128xf32>
    %276 = math.tanh %270 : vector<8x128xf32>
    %277 = vector.extract_strided_slice %275 {offsets = [0, 0], sizes = [8, 32], strides = [1, 1]} : vector<8x128xf32> to vector<8x32xf32>
    %278 = vector.extract_strided_slice %275 {offsets = [0, 32], sizes = [8, 32], strides = [1, 1]} : vector<8x128xf32> to vector<8x32xf32>
    %279 = vector.extract_strided_slice %276 {offsets = [0, 64], sizes = [8, 32], strides = [1, 1]} : vector<8x128xf32> to vector<8x32xf32>
    %280 = vector.extract_strided_slice %275 {offsets = [0, 96], sizes = [8, 32], strides = [1, 1]} : vector<8x128xf32> to vector<8x32xf32>
    %281 = arith.mulf %278, %265 : vector<8x32xf32>
    %282 = arith.mulf %277, %279 : vector<8x32xf32>
    %283 = arith.addf %281, %282 : vector<8x32xf32>
    %284 = math.tanh %283 : vector<8x32xf32>
    %285 = arith.mulf %280, %284 : vector<8x32xf32>
    %286 = vector.extract_strided_slice %11 {offsets = [56, 0], sizes = [8, 128], strides = [1, 1]} : vector<64x128xf32> to vector<8x128xf32>
    %cst_48 = arith.constant dense<0.000000e+00> : vector<8x128xf32>
    %287 = tpu.matmul %285, %13, %cst_48 {dimension_numbers = #tpu.dot_dimension_numbers<[1], [0], [0], [1], [0, 0, 1, 1], [], []>} : vector<8x32xf32>, vector<32x128xf32>, vector<8x128xf32> -> vector<8x128xf32>
    %288 = arith.addf %286, %287 : vector<8x128xf32>
    %289 = arith.negf %288 : vector<8x128xf32>
    %290 = math.exp %289 : vector<8x128xf32>
    %cst_49 = arith.constant 1.000000e+00 : f32
    %291 = vector.broadcast %cst_49 : f32 to vector<8x128xf32>
    %292 = arith.addf %291, %290 : vector<8x128xf32>
    %293 = arith.divf %291, %292 : vector<8x128xf32>
    %294 = math.tanh %288 : vector<8x128xf32>
    %295 = vector.extract_strided_slice %293 {offsets = [0, 0], sizes = [8, 32], strides = [1, 1]} : vector<8x128xf32> to vector<8x32xf32>
    %296 = vector.extract_strided_slice %293 {offsets = [0, 32], sizes = [8, 32], strides = [1, 1]} : vector<8x128xf32> to vector<8x32xf32>
    %297 = vector.extract_strided_slice %294 {offsets = [0, 64], sizes = [8, 32], strides = [1, 1]} : vector<8x128xf32> to vector<8x32xf32>
    %298 = vector.extract_strided_slice %293 {offsets = [0, 96], sizes = [8, 32], strides = [1, 1]} : vector<8x128xf32> to vector<8x32xf32>
    %299 = arith.mulf %296, %283 : vector<8x32xf32>
    %300 = arith.mulf %295, %297 : vector<8x32xf32>
    %301 = arith.addf %299, %300 : vector<8x32xf32>
    %302 = math.tanh %301 : vector<8x32xf32>
    %303 = arith.mulf %298, %302 : vector<8x32xf32>
    %304 = tpu.concatenate %177, %195, %213, %231, %249, %267, %285, %303 in 0 : vector<8x32xf32>, vector<8x32xf32>, vector<8x32xf32>, vector<8x32xf32>, vector<8x32xf32>, vector<8x32xf32>, vector<8x32xf32>, vector<8x32xf32> -> vector<64x32xf32>
    %c0_50 = arith.constant 0 : index
    %c0_51 = arith.constant 0 : index
    %305 = vector.load %arg8[%c0_50, %c0_51] : memref<32x16xf32, #tpu.memory_space<vmem>>, vector<32x16xf32>
    %cst_52 = arith.constant dense<0.000000e+00> : vector<64x16xf32>
    %306 = tpu.matmul %304, %305, %cst_52 {dimension_numbers = #tpu.dot_dimension_numbers<[1], [0], [0], [1], [0, 0, 1, 1], [], []>} : vector<64x32xf32>, vector<32x16xf32>, vector<64x16xf32> -> vector<64x16xf32>
    %c0_53 = arith.constant 0 : index
    %c0_54 = arith.constant 0 : index
    %307 = vector.load %arg9[%c0_53, %c0_54] : memref<1x16xf32, #tpu.memory_space<vmem>>, vector<1x16xf32>
    %308 = vector.broadcast %307 : vector<1x16xf32> to vector<64x16xf32>
    %309 = arith.addf %306, %308 : vector<64x16xf32>
    %c0_55 = arith.constant 0 : index
    %c0_56 = arith.constant 0 : index
    %310 = vector.load %arg10[%c0_55, %c0_56] : memref<64x16xf32, #tpu.memory_space<vmem>>, vector<64x16xf32>
    tpu.vector_store %arg10[%c0_55, %c0_56], %309 {strides = array<i32>} : memref<64x16xf32, #tpu.memory_space<vmem>>, vector<64x16xf32>,
    return
  }
}

</mosaic_0001>

<llo_original>
// kernel: coupler_forward.1
$region0: #{coupler_forward.1}
  #allocation0 [shape = 'u32[]', space=smem, size = 0x4, offset = 0x4, fixed_abs, tag = 'smem constant byte address 0x4 - core index']
  #allocation1 [shape = 'u32[144,128]{1,0:T(1,128)}', space=vmem, size = 0x12000, scoped, tag = 'internal scratch']
  %s0 = inlined_call_operand.vmem [shape: f32[64,16], index: 0, kind: input, shape index: {}]
  %s1 = inlined_call_operand.vmem [shape: f32[64,16], index: 1, kind: input, shape index: {}]
  %s2 = inlined_call_operand.vmem [shape: f32[16,128], index: 2, kind: input, shape index: {}]
  %s3 = inlined_call_operand.vmem [shape: f32[32,128], index: 3, kind: input, shape index: {}]
  %s4 = inlined_call_operand.vmem [shape: f32[1,128], index: 4, kind: input, shape index: {}]
  %s5 = inlined_call_operand.vmem [shape: f32[16,128], index: 5, kind: input, shape index: {}]
  %s6 = inlined_call_operand.vmem [shape: f32[32,128], index: 6, kind: input, shape index: {}]
  %s7 = inlined_call_operand.vmem [shape: f32[1,128], index: 7, kind: input, shape index: {}]
  %s8 = inlined_call_operand.vmem [shape: f32[32,16], index: 8, kind: input, shape index: {}]
  %s9 = inlined_call_operand.vmem [shape: f32[1,16], index: 9, kind: input, shape index: {}]
  %s10 = inlined_call_operand.vmem [shape: f32[64,16], index: 10, kind: output, shape index: {}]
  %s11 = sld [smem:[#allocation0]]
  $region50: #{coupler_forward.1} parent=0
    _
  %s13 = ssub.s32 1, %s11
  %s14 = scalar_select 0, %s13, %s11
  // Predicated region
  $region2: #{coupler_forward.1} parent=0 // pred_check
    _
  $region3: #{coupler_forward.1} parent=0 // pred_check_branch
    %16 = sbr.rel (0) target = $region5
  $region4: #{coupler_forward.1} parent=0 // pred_region
    _
  $region5: #{coupler_forward.1} parent=0 // pred_fallthru
    _
  // Predicated region
  $region6: #{coupler_forward.1} parent=0 // pred_check
    _
  $region7: #{coupler_forward.1} parent=0 // pred_check_branch
    %18 = sbr.rel (0) target = $region9
  $region8: #{coupler_forward.1} parent=0 // pred_region
    _
  $region9: #{coupler_forward.1} parent=0 // pred_fallthru
    _
  // Predicated region
  $region10: #{coupler_forward.1} parent=0 // pred_check
    _
  $region11: #{coupler_forward.1} parent=0 // pred_check_branch
    %20 = sbr.rel (0) target = $region13
  $region12: #{coupler_forward.1} parent=0 // pred_region
    _
  $region13: #{coupler_forward.1} parent=0 // pred_fallthru
    _
  // Predicated region
  $region14: #{coupler_forward.1} parent=0 // pred_check
    _
  $region15: #{coupler_forward.1} parent=0 // pred_check_branch
    %22 = sbr.rel (0) target = $region17
  $region16: #{coupler_forward.1} parent=0 // pred_region
    _
  $region17: #{coupler_forward.1} parent=0 // pred_fallthru
    _
  // Predicated region
  $region18: #{coupler_forward.1} parent=0 // pred_check
    _
  $region19: #{coupler_forward.1} parent=0 // pred_check_branch
    %24 = sbr.rel (0) target = $region21
  $region20: #{coupler_forward.1} parent=0 // pred_region
    _
  $region21: #{coupler_forward.1} parent=0 // pred_fallthru
    _
  // Predicated region
  $region22: #{coupler_forward.1} parent=0 // pred_check
    _
  $region23: #{coupler_forward.1} parent=0 // pred_check_branch
    %26 = sbr.rel (0) target = $region25
  $region24: #{coupler_forward.1} parent=0 // pred_region
    _
  $region25: #{coupler_forward.1} parent=0 // pred_fallthru
    _
  // Predicated region
  $region26: #{coupler_forward.1} parent=0 // pred_check
    _
  $region27: #{coupler_forward.1} parent=0 // pred_check_branch
    %28 = sbr.rel (0) target = $region29
  $region28: #{coupler_forward.1} parent=0 // pred_region
    _
  $region29: #{coupler_forward.1} parent=0 // pred_fallthru
    _
  // Predicated region
  $region30: #{coupler_forward.1} parent=0 // pred_check
    _
  $region31: #{coupler_forward.1} parent=0 // pred_check_branch
    %30 = sbr.rel (0) target = $region33
  $region32: #{coupler_forward.1} parent=0 // pred_region
    _
  $region33: #{coupler_forward.1} parent=0 // pred_fallthru
    _
  // Predicated region
  $region34: #{coupler_forward.1} parent=0 // pred_check
    _
  $region35: #{coupler_forward.1} parent=0 // pred_check_branch
    %32 = sbr.rel (0) target = $region37
  $region36: #{coupler_forward.1} parent=0 // pred_region
    _
  $region37: #{coupler_forward.1} parent=0 // pred_fallthru
    _
  // Predicated region
  $region38: #{coupler_forward.1} parent=0 // pred_check
    _
  $region39: #{coupler_forward.1} parent=0 // pred_check_branch
    %34 = sbr.rel (0) target = $region41
  $region40: #{coupler_forward.1} parent=0 // pred_region
    _
  $region41: #{coupler_forward.1} parent=0 // pred_fallthru
    _
  %v35 = vld [vmem:[%s0] sm:$0xff]
  %v36 = vld [vmem:[%s0 + $0x8] sm:$0xff]
  %v37 = vld [vmem:[%s0 + $0x10] sm:$0xff]
  %v38 = vld [vmem:[%s0 + $0x18] sm:$0xff]
  %v39 = vld [vmem:[%s0 + $0x20] sm:$0xff]
  %v40 = vld [vmem:[%s0 + $0x28] sm:$0xff]
  %v41 = vld [vmem:[%s0 + $0x30] sm:$0xff]
  %v42 = vld [vmem:[%s0 + $0x38] sm:$0xff]
  %v43 = vld [vmem:[%s2] sm:$0xff]
  %v44 = vld [vmem:[%s2 + $0x8] sm:$0xff]
  %v45 = vld [vmem:[%s4] sm:$0x1]
  %v47 = vlaneseq
  %v48 = vshrl.u32 %v47, 7
  %v49 = vsub.s32 0, %v48
  %v50 = vrot.slane %v45, %v49
  %vm52 = vcmask 130048
  %v54 = vsel %vm52, %v35, 0
  %v57 = vsel %vm52, %v36, 0
  %v60 = vsel %vm52, %v37, 0
  %v63 = vsel %vm52, %v38, 0
  %v66 = vsel %vm52, %v39, 0
  %v69 = vsel %vm52, %v40, 0
  %v72 = vsel %vm52, %v41, 0
  %v75 = vsel %vm52, %v42, 0
  %77 = vmatprep.subr.mxu0 0.0
  %78 = vmatpush1.msra.mxu0 %v43
  %79 = vmatprep.subr.mxu0 0.0
  %80 = vmatpush1.msra.mxu0 %v44
  %81 = vmatprep.subr.mxu0 0.0
  %82 = vmatpush1.msra.mxu0 0.0
  %83 = vmatprep.subr.mxu0 0.0
  %84 = vmatpush1.msra.mxu0 0.0
  %85 = vmatprep.subr.mxu0 0.0
  %86 = vmatpush1.msra.mxu0 0.0
  %87 = vmatprep.subr.mxu0 0.0
  %88 = vmatpush1.msra.mxu0 0.0
  %89 = vmatprep.subr.mxu0 0.0
  %90 = vmatpush1.msra.mxu0 0.0
  %91 = vmatprep.subr.mxu0 0.0
  %92 = vmatpush1.msra.mxu0 0.0
  %93 = vmatprep.subr.mxu0 0.0
  %94 = vmatpush1.msra.mxu0 0.0
  %95 = vmatprep.subr.mxu0 0.0
  %96 = vmatpush1.msra.mxu0 0.0
  %97 = vmatprep.subr.mxu0 0.0
  %98 = vmatpush1.msra.mxu0 0.0
  %99 = vmatprep.subr.mxu0 0.0
  %100 = vmatpush1.msra.mxu0 0.0
  %101 = vmatprep.subr.mxu0 0.0
  %102 = vmatpush1.msra.mxu0 0.0
  %103 = vmatprep.subr.mxu0 0.0
  %104 = vmatpush1.msra.mxu0 0.0
  %105 = vmatprep.subr.mxu0 0.0
  %106 = vmatpush1.msra.mxu0 0.0
  %107 = vmatprep.subr.mxu0 0.0
  %108 = vmatpush1.msra.mxu0 0.0
  %109 = vmatprep.subr.mxu0 0.0
  %110 = vmatpush1.msra.mxu0 0.0
  %111 = vmatprep.subr.mxu0 0.0
  %112 = vmatpush1.msra.mxu0 0.0
  %113 = vmatprep.subr.mxu0 0.0
  %114 = vmatpush1.msra.mxu0 0.0
  %115 = vmatprep.subr.mxu0 0.0
  %116 = vmatpush1.msra.mxu0 0.0
  %117 = vmatprep.subr.mxu0 0.0
  %118 = vmatpush1.msra.mxu0 0.0
  %119 = vmatprep.subr.mxu0 0.0
  %120 = vmatpush1.msra.mxu0 0.0
  %121 = vmatprep.subr.mxu0 0.0
  %122 = vmatpush1.msra.mxu0 0.0
  %123 = vmatprep.subr.mxu0 0.0
  %124 = vmatpush1.msra.mxu0 0.0
  %125 = vmatprep.subr.mxu0 0.0
  %126 = vmatpush1.msra.mxu0 0.0
  %127 = vmatprep.subr.mxu0 0.0
  %128 = vmatpush1.msra.mxu0 0.0
  %129 = vmatprep.subr.mxu0 0.0
  %130 = vmatpush1.msra.mxu0 0.0
  %131 = vmatprep.subr.mxu0 0.0
  %132 = vmatpush1.msra.mxu0 0.0
  %133 = vmatprep.subr.mxu0 0.0
  %134 = vmatpush1.msra.mxu0 0.0
  %135 = vmatprep.subr.mxu0 0.0
  %136 = vmatpush1.msra.mxu0 0.0
  %137 = vmatprep.subr.mxu0 0.0
  %138 = vmatpush1.msra.mxu0 0.0
  %139 = vmatprep.subr.mxu0 0.0
  %140 = vmatpush1.msra.mxu0 0.0
  %141 = vmatprep.mubr.f32.mxu0 0.0
  %142 = vmatmul.mubr.f32.gmra.mrb[0].mxu0 %v54
  %v143 = vpop.f32.mrb[0].mxu0
  %v144 = vadd.f32 %v50, %v143
  %v145 = vpop.f32.mrb[0].mxu0
  %146 = vmatprep.mubr.f32.mxu0 0.0
  %147 = vmatmul.mubr.f32.gmra.mrb[0].mxu0 %v57
  %v148 = vpop.f32.mrb[0].mxu0
  %v149 = vadd.f32 %v50, %v148
  %v150 = vpop.f32.mrb[0].mxu0
  %151 = vmatprep.mubr.f32.mxu0 0.0
  %152 = vmatmul.mubr.f32.gmra.mrb[0].mxu0 %v60
  %v153 = vpop.f32.mrb[0].mxu0
  %v154 = vadd.f32 %v50, %v153
  %v155 = vpop.f32.mrb[0].mxu0
  %156 = vmatprep.mubr.f32.mxu0 0.0
  %157 = vmatmul.mubr.f32.gmra.mrb[0].mxu0 %v63
  %v158 = vpop.f32.mrb[0].mxu0
  %v159 = vadd.f32 %v50, %v158
  %v160 = vpop.f32.mrb[0].mxu0
  %161 = vmatprep.mubr.f32.mxu0 0.0
  %162 = vmatmul.mubr.f32.gmra.mrb[0].mxu0 %v66
  %v163 = vpop.f32.mrb[0].mxu0
  %v164 = vadd.f32 %v50, %v163
  %v165 = vpop.f32.mrb[0].mxu0
  %166 = vmatprep.mubr.f32.mxu0 0.0
  %167 = vmatmul.mubr.f32.gmra.mrb[0].mxu0 %v69
  %v168 = vpop.f32.mrb[0].mxu0
  %v169 = vadd.f32 %v50, %v168
  %v170 = vpop.f32.mrb[0].mxu0
  %171 = vmatprep.mubr.f32.mxu0 0.0
  %172 = vmatmul.mubr.f32.gmra.mrb[0].mxu0 %v72
  %v173 = vpop.f32.mrb[0].mxu0
  %v174 = vadd.f32 %v50, %v173
  %v175 = vpop.f32.mrb[0].mxu0
  %176 = vmatprep.mubr.f32.mxu0 0.0
  %177 = vmatmul.mubr.f32.gmra.mrb[0].mxu0 %v75
  %v178 = vpop.f32.mrb[0].mxu0
  %v179 = vadd.f32 %v50, %v178
  %v180 = vpop.f32.mrb[0].mxu0
  %181 = vdwg.mxu0
  %v182 = vld [vmem:[%s1] sm:$0xff]
  %v183 = vld [vmem:[%s1 + $0x8] sm:$0xff]
  %v184 = vld [vmem:[%s1 + $0x10] sm:$0xff]
  %v185 = vld [vmem:[%s1 + $0x18] sm:$0xff]
  %v186 = vld [vmem:[%s1 + $0x20] sm:$0xff]
  %v187 = vld [vmem:[%s1 + $0x28] sm:$0xff]
  %v188 = vld [vmem:[%s1 + $0x30] sm:$0xff]
  %v189 = vld [vmem:[%s1 + $0x38] sm:$0xff]
  %v190 = vld [vmem:[%s5] sm:$0xff]
  %v191 = vld [vmem:[%s5 + $0x8] sm:$0xff]
  %v192 = vld [vmem:[%s7] sm:$0x1]
  %v194 = vlaneseq
  %v195 = vshrl.u32 %v194, 7
  %v196 = vsub.s32 0, %v195
  %v197 = vrot.slane %v192, %v196
  %v200 = vsel %vm52, %v182, 0
  %v203 = vsel %vm52, %v183, 0
  %v206 = vsel %vm52, %v184, 0
  %v209 = vsel %vm52, %v185, 0
  %v212 = vsel %vm52, %v186, 0
  %v215 = vsel %vm52, %v187, 0
  %v218 = vsel %vm52, %v188, 0
  %v221 = vsel %vm52, %v189, 0
  %223 = vmatprep.subr.mxu0 0.0
  %224 = vmatpush1.msra.mxu0 %v190
  %225 = vmatprep.subr.mxu0 0.0
  %226 = vmatpush1.msra.mxu0 %v191
  %227 = vmatprep.subr.mxu0 0.0
  %228 = vmatpush1.msra.mxu0 0.0
  %229 = vmatprep.subr.mxu0 0.0
  %230 = vmatpush1.msra.mxu0 0.0
  %231 = vmatprep.subr.mxu0 0.0
  %232 = vmatpush1.msra.mxu0 0.0
  %233 = vmatprep.subr.mxu0 0.0
  %234 = vmatpush1.msra.mxu0 0.0
  %235 = vmatprep.subr.mxu0 0.0
  %236 = vmatpush1.msra.mxu0 0.0
  %237 = vmatprep.subr.mxu0 0.0
  %238 = vmatpush1.msra.mxu0 0.0
  %239 = vmatprep.subr.mxu0 0.0
  %240 = vmatpush1.msra.mxu0 0.0
  %241 = vmatprep.subr.mxu0 0.0
  %242 = vmatpush1.msra.mxu0 0.0
  %243 = vmatprep.subr.mxu0 0.0
  %244 = vmatpush1.msra.mxu0 0.0
  %245 = vmatprep.subr.mxu0 0.0
  %246 = vmatpush1.msra.mxu0 0.0
  %247 = vmatprep.subr.mxu0 0.0
  %248 = vmatpush1.msra.mxu0 0.0
  %249 = vmatprep.subr.mxu0 0.0
  %250 = vmatpush1.msra.mxu0 0.0
  %251 = vmatprep.subr.mxu0 0.0
  %252 = vmatpush1.msra.mxu0 0.0
  %253 = vmatprep.subr.mxu0 0.0
  %254 = vmatpush1.msra.mxu0 0.0
  %255 = vmatprep.subr.mxu0 0.0
  %256 = vmatpush1.msra.mxu0 0.0
  %257 = vmatprep.subr.mxu0 0.0
  %258 = vmatpush1.msra.mxu0 0.0
  %259 = vmatprep.subr.mxu0 0.0
  %260 = vmatpush1.msra.mxu0 0.0
  %261 = vmatprep.subr.mxu0 0.0
  %262 = vmatpush1.msra.mxu0 0.0
  %263 = vmatprep.subr.mxu0 0.0
  %264 = vmatpush1.msra.mxu0 0.0
  %265 = vmatprep.subr.mxu0 0.0
  %266 = vmatpush1.msra.mxu0 0.0
  %267 = vmatprep.subr.mxu0 0.0
  %268 = vmatpush1.msra.mxu0 0.0
  %269 = vmatprep.subr.mxu0 0.0
  %270 = vmatpush1.msra.mxu0 0.0
  %271 = vmatprep.subr.mxu0 0.0
  %272 = vmatpush1.msra.mxu0 0.0
  %273 = vmatprep.subr.mxu0 0.0
  %274 = vmatpush1.msra.mxu0 0.0
  %275 = vmatprep.subr.mxu0 0.0
  %276 = vmatpush1.msra.mxu0 0.0
  %277 = vmatprep.subr.mxu0 0.0
  %278 = vmatpush1.msra.mxu0 0.0
  %279 = vmatprep.subr.mxu0 0.0
  %280 = vmatpush1.msra.mxu0 0.0
  %281 = vmatprep.subr.mxu0 0.0
  %282 = vmatpush1.msra.mxu0 0.0
  %283 = vmatprep.subr.mxu0 0.0
  %284 = vmatpush1.msra.mxu0 0.0
  %285 = vmatprep.subr.mxu0 0.0
  %286 = vmatpush1.msra.mxu0 0.0
  %287 = vmatprep.mubr.f32.mxu0 0.0
  %288 = vmatmul.mubr.f32.gmra.mrb[0].mxu0 %v200
  %v289 = vpop.f32.mrb[0].mxu0
  %v290 = vadd.f32 %v197, %v289
  %v291 = vpop.f32.mrb[0].mxu0
  %292 = vmatprep.mubr.f32.mxu0 0.0
  %293 = vmatmul.mubr.f32.gmra.mrb[0].mxu0 %v203
  %v294 = vpop.f32.mrb[0].mxu0
  %v295 = vadd.f32 %v197, %v294
  %v296 = vpop.f32.mrb[0].mxu0
  %297 = vmatprep.mubr.f32.mxu0 0.0
  %298 = vmatmul.mubr.f32.gmra.mrb[0].mxu0 %v206
  %v299 = vpop.f32.mrb[0].mxu0
  %v300 = vadd.f32 %v197, %v299
  %v301 = vpop.f32.mrb[0].mxu0
  %302 = vmatprep.mubr.f32.mxu0 0.0
  %303 = vmatmul.mubr.f32.gmra.mrb[0].mxu0 %v209
  %v304 = vpop.f32.mrb[0].mxu0
  %v305 = vadd.f32 %v197, %v304
  %v306 = vpop.f32.mrb[0].mxu0
  %307 = vmatprep.mubr.f32.mxu0 0.0
  %308 = vmatmul.mubr.f32.gmra.mrb[0].mxu0 %v212
  %v309 = vpop.f32.mrb[0].mxu0
  %v310 = vadd.f32 %v197, %v309
  %v311 = vpop.f32.mrb[0].mxu0
  %312 = vmatprep.mubr.f32.mxu0 0.0
  %313 = vmatmul.mubr.f32.gmra.mrb[0].mxu0 %v215
  %v314 = vpop.f32.mrb[0].mxu0
  %v315 = vadd.f32 %v197, %v314
  %v316 = vpop.f32.mrb[0].mxu0
  %317 = vmatprep.mubr.f32.mxu0 0.0
  %318 = vmatmul.mubr.f32.gmra.mrb[0].mxu0 %v218
  %v319 = vpop.f32.mrb[0].mxu0
  %v320 = vadd.f32 %v197, %v319
  %v321 = vpop.f32.mrb[0].mxu0
  %322 = vmatprep.mubr.f32.mxu0 0.0
  %323 = vmatmul.mubr.f32.gmra.mrb[0].mxu0 %v221
  %v324 = vpop.f32.mrb[0].mxu0
  %v325 = vadd.f32 %v197, %v324
  %v326 = vpop.f32.mrb[0].mxu0
  %327 = vdwg.mxu0
  %v328 = vld [vmem:[%s3] sm:$0xff]
  %v329 = vld [vmem:[%s3 + $0x8] sm:$0xff]
  %v330 = vld [vmem:[%s3 + $0x10] sm:$0xff]
  %v331 = vld [vmem:[%s3 + $0x18] sm:$0xff]
  %v332 = vld [vmem:[%s6] sm:$0xff]
  %v333 = vld [vmem:[%s6 + $0x8] sm:$0xff]
  %v334 = vld [vmem:[%s6 + $0x10] sm:$0xff]
  %v335 = vld [vmem:[%s6 + $0x18] sm:$0xff]
  %vm336 = vcmask 261120
  %v338 = vsel %vm336, 0.0, 0
  %340 = vmatprep.subr.mxu0 0.0
  %341 = vmatpush1.msra.mxu0 %v328
  %342 = vmatprep.subr.mxu0 0.0
  %343 = vmatpush1.msra.mxu0 %v329
  %344 = vmatprep.subr.mxu0 0.0
  %345 = vmatpush1.msra.mxu0 %v330
  %346 = vmatprep.subr.mxu0 0.0
  %347 = vmatpush1.msra.mxu0 %v331
  %348 = vmatprep.subr.mxu0 0.0
  %349 = vmatpush1.msra.mxu0 0.0
  %350 = vmatprep.subr.mxu0 0.0
  %351 = vmatpush1.msra.mxu0 0.0
  %352 = vmatprep.subr.mxu0 0.0
  %353 = vmatpush1.msra.mxu0 0.0
  %354 = vmatprep.subr.mxu0 0.0
  %355 = vmatpush1.msra.mxu0 0.0
  %356 = vmatprep.subr.mxu0 0.0
  %357 = vmatpush1.msra.mxu0 0.0
  %358 = vmatprep.subr.mxu0 0.0
  %359 = vmatpush1.msra.mxu0 0.0
  %360 = vmatprep.subr.mxu0 0.0
  %361 = vmatpush1.msra.mxu0 0.0
  %362 = vmatprep.subr.mxu0 0.0
  %363 = vmatpush1.msra.mxu0 0.0
  %364 = vmatprep.subr.mxu0 0.0
  %365 = vmatpush1.msra.mxu0 0.0
  %366 = vmatprep.subr.mxu0 0.0
  %367 = vmatpush1.msra.mxu0 0.0
  %368 = vmatprep.subr.mxu0 0.0
  %369 = vmatpush1.msra.mxu0 0.0
  %370 = vmatprep.subr.mxu0 0.0
  %371 = vmatpush1.msra.mxu0 0.0
  %372 = vmatprep.subr.mxu0 0.0
  %373 = vmatpush1.msra.mxu0 0.0
  %374 = vmatprep.subr.mxu0 0.0
  %375 = vmatpush1.msra.mxu0 0.0
  %376 = vmatprep.subr.mxu0 0.0
  %377 = vmatpush1.msra.mxu0 0.0
  %378 = vmatprep.subr.mxu0 0.0
  %379 = vmatpush1.msra.mxu0 0.0
  %380 = vmatprep.subr.mxu0 0.0
  %381 = vmatpush1.msra.mxu0 0.0
  %382 = vmatprep.subr.mxu0 0.0
  %383 = vmatpush1.msra.mxu0 0.0
  %384 = vmatprep.subr.mxu0 0.0
  %385 = vmatpush1.msra.mxu0 0.0
  %386 = vmatprep.subr.mxu0 0.0
  %387 = vmatpush1.msra.mxu0 0.0
  %388 = vmatprep.subr.mxu0 0.0
  %389 = vmatpush1.msra.mxu0 0.0
  %390 = vmatprep.subr.mxu0 0.0
  %391 = vmatpush1.msra.mxu0 0.0
  %392 = vmatprep.subr.mxu0 0.0
  %393 = vmatpush1.msra.mxu0 0.0
  %394 = vmatprep.subr.mxu0 0.0
  %395 = vmatpush1.msra.mxu0 0.0
  %396 = vmatprep.subr.mxu0 0.0
  %397 = vmatpush1.msra.mxu0 0.0
  %398 = vmatprep.subr.mxu0 0.0
  %399 = vmatpush1.msra.mxu0 0.0
  %400 = vmatprep.subr.mxu0 0.0
  %401 = vmatpush1.msra.mxu0 0.0
  %402 = vmatprep.subr.mxu0 0.0
  %403 = vmatpush1.msra.mxu0 0.0
  %404 = vmatprep.mubr.f32.mxu0 0.0
  %405 = vmatmul.mubr.f32.gmra.mrb[0].mxu0 %v338
  %v406 = vpop.f32.mrb[0].mxu0
  %v407 = vadd.f32 0.0, %v406
  %v408 = vpop.f32.mrb[0].mxu0
  %409 = vdwg.mxu0
  %v410 = vadd.f32 %v144, %v407
  %v411 = vxor.u32 %v410, 2147483648
  %v412 = vmul.f32 %v411, 1.442695
  %v413 = vpow.pop %v412
  %v414 = vadd.f32 %v413, 1.0
  %v415 = vrcp.pop %v414
  %v416 = vmul.f32 1.0, %v415
  %v417 = vtanh.pop %v410
  %v418 = vmul.f32 %v416, 0.0
  %420 = vrot.lane.b32.xlu0 %v417, 64
  %v421 = vpop.permute.xlu0 %420
  %v423 = vmul.f32 %v416, %v421
  %425 = vrot.lane.b32.xlu0 %v423, 32
  %v426 = vpop.permute.xlu0 %425
  %v428 = vadd.f32 %v418, %v426
  %v429 = vtanh.pop %v428
  %431 = vrot.lane.b32.xlu0 %v429, 64
  %v432 = vpop.permute.xlu0 %431
  %v434 = vmul.f32 %v416, %v432
  %436 = vrot.lane.b32.xlu0 %v434, 32
  %v437 = vpop.permute.xlu0 %436
  %v438 = vsel %vm336, %v437, 0
  %440 = vmatprep.subr.mxu0 0.0
  %441 = vmatpush1.msra.mxu0 %v328
  %442 = vmatprep.subr.mxu0 0.0
  %443 = vmatpush1.msra.mxu0 %v329
  %444 = vmatprep.subr.mxu0 0.0
  %445 = vmatpush1.msra.mxu0 %v330
  %446 = vmatprep.subr.mxu0 0.0
  %447 = vmatpush1.msra.mxu0 %v331
  %448 = vmatprep.subr.mxu0 0.0
  %449 = vmatpush1.msra.mxu0 0.0
  %450 = vmatprep.subr.mxu0 0.0
  %451 = vmatpush1.msra.mxu0 0.0
  %452 = vmatprep.subr.mxu0 0.0
  %453 = vmatpush1.msra.mxu0 0.0
  %454 = vmatprep.subr.mxu0 0.0
  %455 = vmatpush1.msra.mxu0 0.0
  %456 = vmatprep.subr.mxu0 0.0
  %457 = vmatpush1.msra.mxu0 0.0
  %458 = vmatprep.subr.mxu0 0.0
  %459 = vmatpush1.msra.mxu0 0.0
  %460 = vmatprep.subr.mxu0 0.0
  %461 = vmatpush1.msra.mxu0 0.0
  %462 = vmatprep.subr.mxu0 0.0
  %463 = vmatpush1.msra.mxu0 0.0
  %464 = vmatprep.subr.mxu0 0.0
  %465 = vmatpush1.msra.mxu0 0.0
  %466 = vmatprep.subr.mxu0 0.0
  %467 = vmatpush1.msra.mxu0 0.0
  %468 = vmatprep.subr.mxu0 0.0
  %469 = vmatpush1.msra.mxu0 0.0
  %470 = vmatprep.subr.mxu0 0.0
  %471 = vmatpush1.msra.mxu0 0.0
  %472 = vmatprep.subr.mxu0 0.0
  %473 = vmatpush1.msra.mxu0 0.0
  %474 = vmatprep.subr.mxu0 0.0
  %475 = vmatpush1.msra.mxu0 0.0
  %476 = vmatprep.subr.mxu0 0.0
  %477 = vmatpush1.msra.mxu0 0.0
  %478 = vmatprep.subr.mxu0 0.0
  %479 = vmatpush1.msra.mxu0 0.0
  %480 = vmatprep.subr.mxu0 0.0
  %481 = vmatpush1.msra.mxu0 0.0
  %482 = vmatprep.subr.mxu0 0.0
  %483 = vmatpush1.msra.mxu0 0.0
  %484 = vmatprep.subr.mxu0 0.0
  %485 = vmatpush1.msra.mxu0 0.0
  %486 = vmatprep.subr.mxu0 0.0
  %487 = vmatpush1.msra.mxu0 0.0
  %488 = vmatprep.subr.mxu0 0.0
  %489 = vmatpush1.msra.mxu0 0.0
  %490 = vmatprep.subr.mxu0 0.0
  %491 = vmatpush1.msra.mxu0 0.0
  %492 = vmatprep.subr.mxu0 0.0
  %493 = vmatpush1.msra.mxu0 0.0
  %494 = vmatprep.subr.mxu0 0.0
  %495 = vmatpush1.msra.mxu0 0.0
  %496 = vmatprep.subr.mxu0 0.0
  %497 = vmatpush1.msra.mxu0 0.0
  %498 = vmatprep.subr.mxu0 0.0
  %499 = vmatpush1.msra.mxu0 0.0
  %500 = vmatprep.subr.mxu0 0.0
  %501 = vmatpush1.msra.mxu0 0.0
  %502 = vmatprep.subr.mxu0 0.0
  %503 = vmatpush1.msra.mxu0 0.0
  %504 = vmatprep.mubr.f32.mxu0 0.0
  %505 = vmatmul.mubr.f32.gmra.mrb[0].mxu0 %v438
  %v506 = vpop.f32.mrb[0].mxu0
  %v507 = vadd.f32 0.0, %v506
  %v508 = vpop.f32.mrb[0].mxu0
  %509 = vdwg.mxu0
  %v510 = vadd.f32 %v149, %v507
  %v511 = vxor.u32 %v510, 2147483648
  %v512 = vmul.f32 %v511, 1.442695
  %v513 = vpow.pop %v512
  %v514 = vadd.f32 %v513, 1.0
  %v515 = vrcp.pop %v514
  %v516 = vmul.f32 1.0, %v515
  %v517 = vtanh.pop %v510
  %v518 = vmul.f32 %v516, %v428
  %520 = vrot.lane.b32.xlu0 %v517, 64
  %v521 = vpop.permute.xlu0 %520
  %v523 = vmul.f32 %v516, %v521
  %525 = vrot.lane.b32.xlu0 %v523, 32
  %v526 = vpop.permute.xlu0 %525
  %v528 = vadd.f32 %v518, %v526
  %v529 = vtanh.pop %v528
  %531 = vrot.lane.b32.xlu0 %v529, 64
  %v532 = vpop.permute.xlu0 %531
  %v534 = vmul.f32 %v516, %v532
  %536 = vrot.lane.b32.xlu0 %v534, 32
  %v537 = vpop.permute.xlu0 %536
  %v538 = vsel %vm336, %v537, 0
  %540 = vmatprep.subr.mxu0 0.0
  %541 = vmatpush1.msra.mxu0 %v328
  %542 = vmatprep.subr.mxu0 0.0
  %543 = vmatpush1.msra.mxu0 %v329
  %544 = vmatprep.subr.mxu0 0.0
  %545 = vmatpush1.msra.mxu0 %v330
  %546 = vmatprep.subr.mxu0 0.0
  %547 = vmatpush1.msra.mxu0 %v331
  %548 = vmatprep.subr.mxu0 0.0
  %549 = vmatpush1.msra.mxu0 0.0
  %550 = vmatprep.subr.mxu0 0.0
  %551 = vmatpush1.msra.mxu0 0.0
  %552 = vmatprep.subr.mxu0 0.0
  %553 = vmatpush1.msra.mxu0 0.0
  %554 = vmatprep.subr.mxu0 0.0
  %555 = vmatpush1.msra.mxu0 0.0
  %556 = vmatprep.subr.mxu0 0.0
  %557 = vmatpush1.msra.mxu0 0.0
  %558 = vmatprep.subr.mxu0 0.0
  %559 = vmatpush1.msra.mxu0 0.0
  %560 = vmatprep.subr.mxu0 0.0
  %561 = vmatpush1.msra.mxu0 0.0
  %562 = vmatprep.subr.mxu0 0.0
  %563 = vmatpush1.msra.mxu0 0.0
  %564 = vmatprep.subr.mxu0 0.0
  %565 = vmatpush1.msra.mxu0 0.0
  %566 = vmatprep.subr.mxu0 0.0
  %567 = vmatpush1.msra.mxu0 0.0
  %568 = vmatprep.subr.mxu0 0.0
  %569 = vmatpush1.msra.mxu0 0.0
  %570 = vmatprep.subr.mxu0 0.0
  %571 = vmatpush1.msra.mxu0 0.0
  %572 = vmatprep.subr.mxu0 0.0
  %573 = vmatpush1.msra.mxu0 0.0
  %574 = vmatprep.subr.mxu0 0.0
  %575 = vmatpush1.msra.mxu0 0.0
  %576 = vmatprep.subr.mxu0 0.0
  %577 = vmatpush1.msra.mxu0 0.0
  %578 = vmatprep.subr.mxu0 0.0
  %579 = vmatpush1.msra.mxu0 0.0
  %580 = vmatprep.subr.mxu0 0.0
  %581 = vmatpush1.msra.mxu0 0.0
  %582 = vmatprep.subr.mxu0 0.0
  %583 = vmatpush1.msra.mxu0 0.0
  %584 = vmatprep.subr.mxu0 0.0
  %585 = vmatpush1.msra.mxu0 0.0
  %586 = vmatprep.subr.mxu0 0.0
  %587 = vmatpush1.msra.mxu0 0.0
  %588 = vmatprep.subr.mxu0 0.0
  %589 = vmatpush1.msra.mxu0 0.0
  %590 = vmatprep.subr.mxu0 0.0
  %591 = vmatpush1.msra.mxu0 0.0
  %592 = vmatprep.subr.mxu0 0.0
  %593 = vmatpush1.msra.mxu0 0.0
  %594 = vmatprep.subr.mxu0 0.0
  %595 = vmatpush1.msra.mxu0 0.0
  %596 = vmatprep.subr.mxu0 0.0
  %597 = vmatpush1.msra.mxu0 0.0
  %598 = vmatprep.subr.mxu0 0.0
  %599 = vmatpush1.msra.mxu0 0.0
  %600 = vmatprep.subr.mxu0 0.0
  %601 = vmatpush1.msra.mxu0 0.0
  %602 = vmatprep.subr.mxu0 0.0
  %603 = vmatpush1.msra.mxu0 0.0
  %604 = vmatprep.mubr.f32.mxu0 0.0
  %605 = vmatmul.mubr.f32.gmra.mrb[0].mxu0 %v538
  %v606 = vpop.f32.mrb[0].mxu0
  %v607 = vadd.f32 0.0, %v606
  %v608 = vpop.f32.mrb[0].mxu0
  %609 = vdwg.mxu0
  %v610 = vadd.f32 %v154, %v607
  %v611 = vxor.u32 %v610, 2147483648
  %v612 = vmul.f32 %v611, 1.442695
  %v613 = vpow.pop %v612
  %v614 = vadd.f32 %v613, 1.0
  %v615 = vrcp.pop %v614
  %v616 = vmul.f32 1.0, %v615
  %v617 = vtanh.pop %v610
  %v618 = vmul.f32 %v616, %v528
  %620 = vrot.lane.b32.xlu0 %v617, 64
  %v621 = vpop.permute.xlu0 %620
  %v623 = vmul.f32 %v616, %v621
  %625 = vrot.lane.b32.xlu0 %v623, 32
  %v626 = vpop.permute.xlu0 %625
  %v628 = vadd.f32 %v618, %v626
  %v629 = vtanh.pop %v628
  %631 = vrot.lane.b32.xlu0 %v629, 64
  %v632 = vpop.permute.xlu0 %631
  %v634 = vmul.f32 %v616, %v632
  %636 = vrot.lane.b32.xlu0 %v634, 32
  %v637 = vpop.permute.xlu0 %636
  %v638 = vsel %vm336, %v637, 0
  %640 = vmatprep.subr.mxu0 0.0
  %641 = vmatpush1.msra.mxu0 %v328
  %642 = vmatprep.subr.mxu0 0.0
  %643 = vmatpush1.msra.mxu0 %v329
  %644 = vmatprep.subr.mxu0 0.0
  %645 = vmatpush1.msra.mxu0 %v330
  %646 = vmatprep.subr.mxu0 0.0
  %647 = vmatpush1.msra.mxu0 %v331
  %648 = vmatprep.subr.mxu0 0.0
  %649 = vmatpush1.msra.mxu0 0.0
  %650 = vmatprep.subr.mxu0 0.0
  %651 = vmatpush1.msra.mxu0 0.0
  %652 = vmatprep.subr.mxu0 0.0
  %653 = vmatpush1.msra.mxu0 0.0
  %654 = vmatprep.subr.mxu0 0.0
  %655 = vmatpush1.msra.mxu0 0.0
  %656 = vmatprep.subr.mxu0 0.0
  %657 = vmatpush1.msra.mxu0 0.0
  %658 = vmatprep.subr.mxu0 0.0
  %659 = vmatpush1.msra.mxu0 0.0
  %660 = vmatprep.subr.mxu0 0.0
  %661 = vmatpush1.msra.mxu0 0.0
  %662 = vmatprep.subr.mxu0 0.0
  %663 = vmatpush1.msra.mxu0 0.0
  %664 = vmatprep.subr.mxu0 0.0
  %665 = vmatpush1.msra.mxu0 0.0
  %666 = vmatprep.subr.mxu0 0.0
  %667 = vmatpush1.msra.mxu0 0.0
  %668 = vmatprep.subr.mxu0 0.0
  %669 = vmatpush1.msra.mxu0 0.0
  %670 = vmatprep.subr.mxu0 0.0
  %671 = vmatpush1.msra.mxu0 0.0
  %672 = vmatprep.subr.mxu0 0.0
  %673 = vmatpush1.msra.mxu0 0.0
  %674 = vmatprep.subr.mxu0 0.0
  %675 = vmatpush1.msra.mxu0 0.0
  %676 = vmatprep.subr.mxu0 0.0
  %677 = vmatpush1.msra.mxu0 0.0
  %678 = vmatprep.subr.mxu0 0.0
  %679 = vmatpush1.msra.mxu0 0.0
  %680 = vmatprep.subr.mxu0 0.0
  %681 = vmatpush1.msra.mxu0 0.0
  %682 = vmatprep.subr.mxu0 0.0
  %683 = vmatpush1.msra.mxu0 0.0
  %684 = vmatprep.subr.mxu0 0.0
  %685 = vmatpush1.msra.mxu0 0.0
  %686 = vmatprep.subr.mxu0 0.0
  %687 = vmatpush1.msra.mxu0 0.0
  %688 = vmatprep.subr.mxu0 0.0
  %689 = vmatpush1.msra.mxu0 0.0
  %690 = vmatprep.subr.mxu0 0.0
  %691 = vmatpush1.msra.mxu0 0.0
  %692 = vmatprep.subr.mxu0 0.0
  %693 = vmatpush1.msra.mxu0 0.0
  %694 = vmatprep.subr.mxu0 0.0
  %695 = vmatpush1.msra.mxu0 0.0
  %696 = vmatprep.subr.mxu0 0.0
  %697 = vmatpush1.msra.mxu0 0.0
  %698 = vmatprep.subr.mxu0 0.0
  %699 = vmatpush1.msra.mxu0 0.0
  %700 = vmatprep.subr.mxu0 0.0
  %701 = vmatpush1.msra.mxu0 0.0
  %702 = vmatprep.subr.mxu0 0.0
  %703 = vmatpush1.msra.mxu0 0.0
  %704 = vmatprep.mubr.f32.mxu0 0.0
  %705 = vmatmul.mubr.f32.gmra.mrb[0].mxu0 %v638
  %v706 = vpop.f32.mrb[0].mxu0
  %v707 = vadd.f32 0.0, %v706
  %v708 = vpop.f32.mrb[0].mxu0
  %709 = vdwg.mxu0
  %v710 = vadd.f32 %v159, %v707
  %v711 = vxor.u32 %v710, 2147483648
  %v712 = vmul.f32 %v711, 1.442695
  %v713 = vpow.pop %v712
  %v714 = vadd.f32 %v713, 1.0
  %v715 = vrcp.pop %v714
  %v716 = vmul.f32 1.0, %v715
  %v717 = vtanh.pop %v710
  %v718 = vmul.f32 %v716, %v628
  %720 = vrot.lane.b32.xlu0 %v717, 64
  %v721 = vpop.permute.xlu0 %720
  %v723 = vmul.f32 %v716, %v721
  %725 = vrot.lane.b32.xlu0 %v723, 32
  %v726 = vpop.permute.xlu0 %725
  %v728 = vadd.f32 %v718, %v726
  %v729 = vtanh.pop %v728
  %731 = vrot.lane.b32.xlu0 %v729, 64
  %v732 = vpop.permute.xlu0 %731
  %v734 = vmul.f32 %v716, %v732
  %736 = vrot.lane.b32.xlu0 %v734, 32
  %v737 = vpop.permute.xlu0 %736
  %v738 = vsel %vm336, %v737, 0
  %740 = vmatprep.subr.mxu0 0.0
  %741 = vmatpush1.msra.mxu0 %v328
  %742 = vmatprep.subr.mxu0 0.0
  %743 = vmatpush1.msra.mxu0 %v329
  %744 = vmatprep.subr.mxu0 0.0
  %745 = vmatpush1.msra.mxu0 %v330
  %746 = vmatprep.subr.mxu0 0.0
  %747 = vmatpush1.msra.mxu0 %v331
  %748 = vmatprep.subr.mxu0 0.0
  %749 = vmatpush1.msra.mxu0 0.0
  %750 = vmatprep.subr.mxu0 0.0
  %751 = vmatpush1.msra.mxu0 0.0
  %752 = vmatprep.subr.mxu0 0.0
  %753 = vmatpush1.msra.mxu0 0.0
  %754 = vmatprep.subr.mxu0 0.0
  %755 = vmatpush1.msra.mxu0 0.0
  %756 = vmatprep.subr.mxu0 0.0
  %757 = vmatpush1.msra.mxu0 0.0
  %758 = vmatprep.subr.mxu0 0.0
  %759 = vmatpush1.msra.mxu0 0.0
  %760 = vmatprep.subr.mxu0 0.0
  %761 = vmatpush1.msra.mxu0 0.0
  %762 = vmatprep.subr.mxu0 0.0
  %763 = vmatpush1.msra.mxu0 0.0
  %764 = vmatprep.subr.mxu0 0.0
  %765 = vmatpush1.msra.mxu0 0.0
  %766 = vmatprep.subr.mxu0 0.0
  %767 = vmatpush1.msra.mxu0 0.0
  %768 = vmatprep.subr.mxu0 0.0
  %769 = vmatpush1.msra.mxu0 0.0
  %770 = vmatprep.subr.mxu0 0.0
  %771 = vmatpush1.msra.mxu0 0.0
  %772 = vmatprep.subr.mxu0 0.0
  %773 = vmatpush1.msra.mxu0 0.0
  %774 = vmatprep.subr.mxu0 0.0
  %775 = vmatpush1.msra.mxu0 0.0
  %776 = vmatprep.subr.mxu0 0.0
  %777 = vmatpush1.msra.mxu0 0.0
  %778 = vmatprep.subr.mxu0 0.0
  %779 = vmatpush1.msra.mxu0 0.0
  %780 = vmatprep.subr.mxu0 0.0
  %781 = vmatpush1.msra.mxu0 0.0
  %782 = vmatprep.subr.mxu0 0.0
  %783 = vmatpush1.msra.mxu0 0.0
  %784 = vmatprep.subr.mxu0 0.0
  %785 = vmatpush1.msra.mxu0 0.0
  %786 = vmatprep.subr.mxu0 0.0
  %787 = vmatpush1.msra.mxu0 0.0
  %788 = vmatprep.subr.mxu0 0.0
  %789 = vmatpush1.msra.mxu0 0.0
  %790 = vmatprep.subr.mxu0 0.0
  %791 = vmatpush1.msra.mxu0 0.0
  %792 = vmatprep.subr.mxu0 0.0
  %793 = vmatpush1.msra.mxu0 0.0
  %794 = vmatprep.subr.mxu0 0.0
  %795 = vmatpush1.msra.mxu0 0.0
  %796 = vmatprep.subr.mxu0 0.0
  %797 = vmatpush1.msra.mxu0 0.0
  %798 = vmatprep.subr.mxu0 0.0
  %799 = vmatpush1.msra.mxu0 0.0
  %800 = vmatprep.subr.mxu0 0.0
  %801 = vmatpush1.msra.mxu0 0.0
  %802 = vmatprep.subr.mxu0 0.0
  %803 = vmatpush1.msra.mxu0 0.0
  %804 = vmatprep.mubr.f32.mxu0 0.0
  %805 = vmatmul.mubr.f32.gmra.mrb[0].mxu0 %v738
  %v806 = vpop.f32.mrb[0].mxu0
  %v807 = vadd.f32 0.0, %v806
  %v808 = vpop.f32.mrb[0].mxu0
  %809 = vdwg.mxu0
  %v810 = vadd.f32 %v164, %v807
  %v811 = vxor.u32 %v810, 2147483648
  %v812 = vmul.f32 %v811, 1.442695
  %v813 = vpow.pop %v812
  %v814 = vadd.f32 %v813, 1.0
  %v815 = vrcp.pop %v814
  %v816 = vmul.f32 1.0, %v815
  %v817 = vtanh.pop %v810
  %v818 = vmul.f32 %v816, %v728
  %820 = vrot.lane.b32.xlu0 %v817, 64
  %v821 = vpop.permute.xlu0 %820
  %v823 = vmul.f32 %v816, %v821
  %825 = vrot.lane.b32.xlu0 %v823, 32
  %v826 = vpop.permute.xlu0 %825
  %v828 = vadd.f32 %v818, %v826
  %v829 = vtanh.pop %v828
  %831 = vrot.lane.b32.xlu0 %v829, 64
  %v832 = vpop.permute.xlu0 %831
  %v834 = vmul.f32 %v816, %v832
  %836 = vrot.lane.b32.xlu0 %v834, 32
  %v837 = vpop.permute.xlu0 %836
  %v838 = vsel %vm336, %v837, 0
  %840 = vmatprep.subr.mxu0 0.0
  %841 = vmatpush1.msra.mxu0 %v328
  %842 = vmatprep.subr.mxu0 0.0
  %843 = vmatpush1.msra.mxu0 %v329
  %844 = vmatprep.subr.mxu0 0.0
  %845 = vmatpush1.msra.mxu0 %v330
  %846 = vmatprep.subr.mxu0 0.0
  %847 = vmatpush1.msra.mxu0 %v331
  %848 = vmatprep.subr.mxu0 0.0
  %849 = vmatpush1.msra.mxu0 0.0
  %850 = vmatprep.subr.mxu0 0.0
  %851 = vmatpush1.msra.mxu0 0.0
  %852 = vmatprep.subr.mxu0 0.0
  %853 = vmatpush1.msra.mxu0 0.0
  %854 = vmatprep.subr.mxu0 0.0
  %855 = vmatpush1.msra.mxu0 0.0
  %856 = vmatprep.subr.mxu0 0.0
  %857 = vmatpush1.msra.mxu0 0.0
  %858 = vmatprep.subr.mxu0 0.0
  %859 = vmatpush1.msra.mxu0 0.0
  %860 = vmatprep.subr.mxu0 0.0
  %861 = vmatpush1.msra.mxu0 0.0
  %862 = vmatprep.subr.mxu0 0.0
  %863 = vmatpush1.msra.mxu0 0.0
  %864 = vmatprep.subr.mxu0 0.0
  %865 = vmatpush1.msra.mxu0 0.0
  %866 = vmatprep.subr.mxu0 0.0
  %867 = vmatpush1.msra.mxu0 0.0
  %868 = vmatprep.subr.mxu0 0.0
  %869 = vmatpush1.msra.mxu0 0.0
  %870 = vmatprep.subr.mxu0 0.0
  %871 = vmatpush1.msra.mxu0 0.0
  %872 = vmatprep.subr.mxu0 0.0
  %873 = vmatpush1.msra.mxu0 0.0
  %874 = vmatprep.subr.mxu0 0.0
  %875 = vmatpush1.msra.mxu0 0.0
  %876 = vmatprep.subr.mxu0 0.0
  %877 = vmatpush1.msra.mxu0 0.0
  %878 = vmatprep.subr.mxu0 0.0
  %879 = vmatpush1.msra.mxu0 0.0
  %880 = vmatprep.subr.mxu0 0.0
  %881 = vmatpush1.msra.mxu0 0.0
  %882 = vmatprep.subr.mxu0 0.0
  %883 = vmatpush1.msra.mxu0 0.0
  %884 = vmatprep.subr.mxu0 0.0
  %885 = vmatpush1.msra.mxu0 0.0
  %886 = vmatprep.subr.mxu0 0.0
  %887 = vmatpush1.msra.mxu0 0.0
  %888 = vmatprep.subr.mxu0 0.0
  %889 = vmatpush1.msra.mxu0 0.0
  %890 = vmatprep.subr.mxu0 0.0
  %891 = vmatpush1.msra.mxu0 0.0
  %892 = vmatprep.subr.mxu0 0.0
  %893 = vmatpush1.msra.mxu0 0.0
  %894 = vmatprep.subr.mxu0 0.0
  %895 = vmatpush1.msra.mxu0 0.0
  %896 = vmatprep.subr.mxu0 0.0
  %897 = vmatpush1.msra.mxu0 0.0
  %898 = vmatprep.subr.mxu0 0.0
  %899 = vmatpush1.msra.mxu0 0.0
  %900 = vmatprep.subr.mxu0 0.0
  %901 = vmatpush1.msra.mxu0 0.0
  %902 = vmatprep.subr.mxu0 0.0
  %903 = vmatpush1.msra.mxu0 0.0
  %904 = vmatprep.mubr.f32.mxu0 0.0
  %905 = vmatmul.mubr.f32.gmra.mrb[0].mxu0 %v838
  %v906 = vpop.f32.mrb[0].mxu0
  %v907 = vadd.f32 0.0, %v906
  %v908 = vpop.f32.mrb[0].mxu0
  %909 = vdwg.mxu0
  %v910 = vadd.f32 %v169, %v907
  %v911 = vxor.u32 %v910, 2147483648
  %v912 = vmul.f32 %v911, 1.442695
  %v913 = vpow.pop %v912
  %v914 = vadd.f32 %v913, 1.0
  %v915 = vrcp.pop %v914
  %v916 = vmul.f32 1.0, %v915
  %v917 = vtanh.pop %v910
  %v918 = vmul.f32 %v916, %v828
  %920 = vrot.lane.b32.xlu0 %v917, 64
  %v921 = vpop.permute.xlu0 %920
  %v923 = vmul.f32 %v916, %v921
  %925 = vrot.lane.b32.xlu0 %v923, 32
  %v926 = vpop.permute.xlu0 %925
  %v928 = vadd.f32 %v918, %v926
  %v929 = vtanh.pop %v928
  %931 = vrot.lane.b32.xlu0 %v929, 64
  %v932 = vpop.permute.xlu0 %931
  %v934 = vmul.f32 %v916, %v932
  %936 = vrot.lane.b32.xlu0 %v934, 32
  %v937 = vpop.permute.xlu0 %936
  %v938 = vsel %vm336, %v937, 0
  %940 = vmatprep.subr.mxu0 0.0
  %941 = vmatpush1.msra.mxu0 %v328
  %942 = vmatprep.subr.mxu0 0.0
  %943 = vmatpush1.msra.mxu0 %v329
  %944 = vmatprep.subr.mxu0 0.0
  %945 = vmatpush1.msra.mxu0 %v330
  %946 = vmatprep.subr.mxu0 0.0
  %947 = vmatpush1.msra.mxu0 %v331
  %948 = vmatprep.subr.mxu0 0.0
  %949 = vmatpush1.msra.mxu0 0.0
  %950 = vmatprep.subr.mxu0 0.0
  %951 = vmatpush1.msra.mxu0 0.0
  %952 = vmatprep.subr.mxu0 0.0
  %953 = vmatpush1.msra.mxu0 0.0
  %954 = vmatprep.subr.mxu0 0.0
  %955 = vmatpush1.msra.mxu0 0.0
  %956 = vmatprep.subr.mxu0 0.0
  %957 = vmatpush1.msra.mxu0 0.0
  %958 = vmatprep.subr.mxu0 0.0
  %959 = vmatpush1.msra.mxu0 0.0
  %960 = vmatprep.subr.mxu0 0.0
  %961 = vmatpush1.msra.mxu0 0.0
  %962 = vmatprep.subr.mxu0 0.0
  %963 = vmatpush1.msra.mxu0 0.0
  %964 = vmatprep.subr.mxu0 0.0
  %965 = vmatpush1.msra.mxu0 0.0
  %966 = vmatprep.subr.mxu0 0.0
  %967 = vmatpush1.msra.mxu0 0.0
  %968 = vmatprep.subr.mxu0 0.0
  %969 = vmatpush1.msra.mxu0 0.0
  %970 = vmatprep.subr.mxu0 0.0
  %971 = vmatpush1.msra.mxu0 0.0
  %972 = vmatprep.subr.mxu0 0.0
  %973 = vmatpush1.msra.mxu0 0.0
  %974 = vmatprep.subr.mxu0 0.0
  %975 = vmatpush1.msra.mxu0 0.0
  %976 = vmatprep.subr.mxu0 0.0
  %977 = vmatpush1.msra.mxu0 0.0
  %978 = vmatprep.subr.mxu0 0.0
  %979 = vmatpush1.msra.mxu0 0.0
  %980 = vmatprep.subr.mxu0 0.0
  %981 = vmatpush1.msra.mxu0 0.0
  %982 = vmatprep.subr.mxu0 0.0
  %983 = vmatpush1.msra.mxu0 0.0
  %984 = vmatprep.subr.mxu0 0.0
  %985 = vmatpush1.msra.mxu0 0.0
  %986 = vmatprep.subr.mxu0 0.0
  %987 = vmatpush1.msra.mxu0 0.0
  %988 = vmatprep.subr.mxu0 0.0
  %989 = vmatpush1.msra.mxu0 0.0
  %990 = vmatprep.subr.mxu0 0.0
  %991 = vmatpush1.msra.mxu0 0.0
  %992 = vmatprep.subr.mxu0 0.0
  %993 = vmatpush1.msra.mxu0 0.0
  %994 = vmatprep.subr.mxu0 0.0
  %995 = vmatpush1.msra.mxu0 0.0
  %996 = vmatprep.subr.mxu0 0.0
  %997 = vmatpush1.msra.mxu0 0.0
  %998 = vmatprep.subr.mxu0 0.0
  %999 = vmatpush1.msra.mxu0 0.0
  %1000 = vmatprep.subr.mxu0 0.0
  %1001 = vmatpush1.msra.mxu0 0.0
  %1002 = vmatprep.subr.mxu0 0.0
  %1003 = vmatpush1.msra.mxu0 0.0
  %1004 = vmatprep.mubr.f32.mxu0 0.0
  %1005 = vmatmul.mubr.f32.gmra.mrb[0].mxu0 %v938
  %v1006 = vpop.f32.mrb[0].mxu0
  %v1007 = vadd.f32 0.0, %v1006
  %v1008 = vpop.f32.mrb[0].mxu0
  %1009 = vdwg.mxu0
  %v1010 = vadd.f32 %v174, %v1007
  %v1011 = vxor.u32 %v1010, 2147483648
  %v1012 = vmul.f32 %v1011, 1.442695
  %v1013 = vpow.pop %v1012
  %v1014 = vadd.f32 %v1013, 1.0
  %v1015 = vrcp.pop %v1014
  %v1016 = vmul.f32 1.0, %v1015
  %v1017 = vtanh.pop %v1010
  %v1018 = vmul.f32 %v1016, %v928
  %1020 = vrot.lane.b32.xlu0 %v1017, 64
  %v1021 = vpop.permute.xlu0 %1020
  %v1023 = vmul.f32 %v1016, %v1021
  %1025 = vrot.lane.b32.xlu0 %v1023, 32
  %v1026 = vpop.permute.xlu0 %1025
  %v1028 = vadd.f32 %v1018, %v1026
  %v1029 = vtanh.pop %v1028
  %1031 = vrot.lane.b32.xlu0 %v1029, 64
  %v1032 = vpop.permute.xlu0 %1031
  %v1034 = vmul.f32 %v1016, %v1032
  %1036 = vrot.lane.b32.xlu0 %v1034, 32
  %v1037 = vpop.permute.xlu0 %1036
  %v1038 = vsel %vm336, %v1037, 0
  %1040 = vmatprep.subr.mxu0 0.0
  %1041 = vmatpush1.msra.mxu0 %v328
  %1042 = vmatprep.subr.mxu0 0.0
  %1043 = vmatpush1.msra.mxu0 %v329
  %1044 = vmatprep.subr.mxu0 0.0
  %1045 = vmatpush1.msra.mxu0 %v330
  %1046 = vmatprep.subr.mxu0 0.0
  %1047 = vmatpush1.msra.mxu0 %v331
  %1048 = vmatprep.subr.mxu0 0.0
  %1049 = vmatpush1.msra.mxu0 0.0
  %1050 = vmatprep.subr.mxu0 0.0
  %1051 = vmatpush1.msra.mxu0 0.0
  %1052 = vmatprep.subr.mxu0 0.0
  %1053 = vmatpush1.msra.mxu0 0.0
  %1054 = vmatprep.subr.mxu0 0.0
  %1055 = vmatpush1.msra.mxu0 0.0
  %1056 = vmatprep.subr.mxu0 0.0
  %1057 = vmatpush1.msra.mxu0 0.0
  %1058 = vmatprep.subr.mxu0 0.0
  %1059 = vmatpush1.msra.mxu0 0.0
  %1060 = vmatprep.subr.mxu0 0.0
  %1061 = vmatpush1.msra.mxu0 0.0
  %1062 = vmatprep.subr.mxu0 0.0
  %1063 = vmatpush1.msra.mxu0 0.0
  %1064 = vmatprep.subr.mxu0 0.0
  %1065 = vmatpush1.msra.mxu0 0.0
  %1066 = vmatprep.subr.mxu0 0.0
  %1067 = vmatpush1.msra.mxu0 0.0
  %1068 = vmatprep.subr.mxu0 0.0
  %1069 = vmatpush1.msra.mxu0 0.0
  %1070 = vmatprep.subr.mxu0 0.0
  %1071 = vmatpush1.msra.mxu0 0.0
  %1072 = vmatprep.subr.mxu0 0.0
  %1073 = vmatpush1.msra.mxu0 0.0
  %1074 = vmatprep.subr.mxu0 0.0
  %1075 = vmatpush1.msra.mxu0 0.0
  %1076 = vmatprep.subr.mxu0 0.0
  %1077 = vmatpush1.msra.mxu0 0.0
  %1078 = vmatprep.subr.mxu0 0.0
  %1079 = vmatpush1.msra.mxu0 0.0
  %1080 = vmatprep.subr.mxu0 0.0
  %1081 = vmatpush1.msra.mxu0 0.0
  %1082 = vmatprep.subr.mxu0 0.0
  %1083 = vmatpush1.msra.mxu0 0.0
  %1084 = vmatprep.subr.mxu0 0.0
  %1085 = vmatpush1.msra.mxu0 0.0
  %1086 = vmatprep.subr.mxu0 0.0
  %1087 = vmatpush1.msra.mxu0 0.0
  %1088 = vmatprep.subr.mxu0 0.0
  %1089 = vmatpush1.msra.mxu0 0.0
  %1090 = vmatprep.subr.mxu0 0.0
  %1091 = vmatpush1.msra.mxu0 0.0
  %1092 = vmatprep.subr.mxu0 0.0
  %1093 = vmatpush1.msra.mxu0 0.0
  %1094 = vmatprep.subr.mxu0 0.0
  %1095 = vmatpush1.msra.mxu0 0.0
  %1096 = vmatprep.subr.mxu0 0.0
  %1097 = vmatpush1.msra.mxu0 0.0
  %1098 = vmatprep.subr.mxu0 0.0
  %1099 = vmatpush1.msra.mxu0 0.0
  %1100 = vmatprep.subr.mxu0 0.0
  %1101 = vmatpush1.msra.mxu0 0.0
  %1102 = vmatprep.subr.mxu0 0.0
  %1103 = vmatpush1.msra.mxu0 0.0
  %1104 = vmatprep.mubr.f32.mxu0 0.0
  %1105 = vmatmul.mubr.f32.gmra.mrb[0].mxu0 %v1038
  %v1106 = vpop.f32.mrb[0].mxu0
  %v1107 = vadd.f32 0.0, %v1106
  %v1108 = vpop.f32.mrb[0].mxu0
  %1109 = vdwg.mxu0
  %v1110 = vadd.f32 %v179, %v1107
  %v1111 = vxor.u32 %v1110, 2147483648
  %v1112 = vmul.f32 %v1111, 1.442695
  %v1113 = vpow.pop %v1112
  %v1114 = vadd.f32 %v1113, 1.0
  %v1115 = vrcp.pop %v1114
  %v1116 = vmul.f32 1.0, %v1115
  %v1117 = vtanh.pop %v1110
  %v1118 = vmul.f32 %v1116, %v1028
  %1120 = vrot.lane.b32.xlu0 %v1117, 64
  %v1121 = vpop.permute.xlu0 %1120
  %v1123 = vmul.f32 %v1116, %v1121
  %1125 = vrot.lane.b32.xlu0 %v1123, 32
  %v1126 = vpop.permute.xlu0 %1125
  %v1128 = vadd.f32 %v1118, %v1126
  %v1129 = vtanh.pop %v1128
  %1131 = vrot.lane.b32.xlu0 %v1129, 64
  %v1132 = vpop.permute.xlu0 %1131
  %v1134 = vmul.f32 %v1116, %v1132
  %1136 = vrot.lane.b32.xlu0 %v1134, 32
  %v1137 = vpop.permute.xlu0 %1136
  %v1138 = vsel %vm336, %v1137, 0
  %1140 = vmatprep.subr.mxu0 0.0
  %1141 = vmatpush1.msra.mxu0 %v332
  %1142 = vmatprep.subr.mxu0 0.0
  %1143 = vmatpush1.msra.mxu0 %v333
  %1144 = vmatprep.subr.mxu0 0.0
  %1145 = vmatpush1.msra.mxu0 %v334
  %1146 = vmatprep.subr.mxu0 0.0
  %1147 = vmatpush1.msra.mxu0 %v335
  %1148 = vmatprep.subr.mxu0 0.0
  %1149 = vmatpush1.msra.mxu0 0.0
  %1150 = vmatprep.subr.mxu0 0.0
  %1151 = vmatpush1.msra.mxu0 0.0
  %1152 = vmatprep.subr.mxu0 0.0
  %1153 = vmatpush1.msra.mxu0 0.0
  %1154 = vmatprep.subr.mxu0 0.0
  %1155 = vmatpush1.msra.mxu0 0.0
  %1156 = vmatprep.subr.mxu0 0.0
  %1157 = vmatpush1.msra.mxu0 0.0
  %1158 = vmatprep.subr.mxu0 0.0
  %1159 = vmatpush1.msra.mxu0 0.0
  %1160 = vmatprep.subr.mxu0 0.0
  %1161 = vmatpush1.msra.mxu0 0.0
  %1162 = vmatprep.subr.mxu0 0.0
  %1163 = vmatpush1.msra.mxu0 0.0
  %1164 = vmatprep.subr.mxu0 0.0
  %1165 = vmatpush1.msra.mxu0 0.0
  %1166 = vmatprep.subr.mxu0 0.0
  %1167 = vmatpush1.msra.mxu0 0.0
  %1168 = vmatprep.subr.mxu0 0.0
  %1169 = vmatpush1.msra.mxu0 0.0
  %1170 = vmatprep.subr.mxu0 0.0
  %1171 = vmatpush1.msra.mxu0 0.0
  %1172 = vmatprep.subr.mxu0 0.0
  %1173 = vmatpush1.msra.mxu0 0.0
  %1174 = vmatprep.subr.mxu0 0.0
  %1175 = vmatpush1.msra.mxu0 0.0
  %1176 = vmatprep.subr.mxu0 0.0
  %1177 = vmatpush1.msra.mxu0 0.0
  %1178 = vmatprep.subr.mxu0 0.0
  %1179 = vmatpush1.msra.mxu0 0.0
  %1180 = vmatprep.subr.mxu0 0.0
  %1181 = vmatpush1.msra.mxu0 0.0
  %1182 = vmatprep.subr.mxu0 0.0
  %1183 = vmatpush1.msra.mxu0 0.0
  %1184 = vmatprep.subr.mxu0 0.0
  %1185 = vmatpush1.msra.mxu0 0.0
  %1186 = vmatprep.subr.mxu0 0.0
  %1187 = vmatpush1.msra.mxu0 0.0
  %1188 = vmatprep.subr.mxu0 0.0
  %1189 = vmatpush1.msra.mxu0 0.0
  %1190 = vmatprep.subr.mxu0 0.0
  %1191 = vmatpush1.msra.mxu0 0.0
  %1192 = vmatprep.subr.mxu0 0.0
  %1193 = vmatpush1.msra.mxu0 0.0
  %1194 = vmatprep.subr.mxu0 0.0
  %1195 = vmatpush1.msra.mxu0 0.0
  %1196 = vmatprep.subr.mxu0 0.0
  %1197 = vmatpush1.msra.mxu0 0.0
  %1198 = vmatprep.subr.mxu0 0.0
  %1199 = vmatpush1.msra.mxu0 0.0
  %1200 = vmatprep.subr.mxu0 0.0
  %1201 = vmatpush1.msra.mxu0 0.0
  %1202 = vmatprep.subr.mxu0 0.0
  %1203 = vmatpush1.msra.mxu0 0.0
  %1204 = vmatprep.mubr.f32.mxu0 0.0
  %1205 = vmatmul.mubr.f32.gmra.mrb[0].mxu0 %v1138
  %v1206 = vpop.f32.mrb[0].mxu0
  %v1207 = vadd.f32 0.0, %v1206
  %v1208 = vpop.f32.mrb[0].mxu0
  %1209 = vdwg.mxu0
  %v1210 = vadd.f32 %v290, %v1207
  %v1211 = vxor.u32 %v1210, 2147483648
  %v1212 = vmul.f32 %v1211, 1.442695
  %v1213 = vpow.pop %v1212
  %v1214 = vadd.f32 %v1213, 1.0
  %v1215 = vrcp.pop %v1214
  %v1216 = vmul.f32 1.0, %v1215
  %v1217 = vtanh.pop %v1210
  %v1218 = vmul.f32 %v1216, %v1128
  %1220 = vrot.lane.b32.xlu0 %v1217, 64
  %v1221 = vpop.permute.xlu0 %1220
  %v1223 = vmul.f32 %v1216, %v1221
  %1225 = vrot.lane.b32.xlu0 %v1223, 32
  %v1226 = vpop.permute.xlu0 %1225
  %v1228 = vadd.f32 %v1218, %v1226
  %v1229 = vtanh.pop %v1228
  %1231 = vrot.lane.b32.xlu0 %v1229, 64
  %v1232 = vpop.permute.xlu0 %1231
  %v1234 = vmul.f32 %v1216, %v1232
  %1236 = vrot.lane.b32.xlu0 %v1234, 32
  %v1237 = vpop.permute.xlu0 %1236
  %v1238 = vsel %vm336, %v1237, 0
  %1240 = vmatprep.subr.mxu0 0.0
  %1241 = vmatpush1.msra.mxu0 %v332
  %1242 = vmatprep.subr.mxu0 0.0
  %1243 = vmatpush1.msra.mxu0 %v333
  %1244 = vmatprep.subr.mxu0 0.0
  %1245 = vmatpush1.msra.mxu0 %v334
  %1246 = vmatprep.subr.mxu0 0.0
  %1247 = vmatpush1.msra.mxu0 %v335
  %1248 = vmatprep.subr.mxu0 0.0
  %1249 = vmatpush1.msra.mxu0 0.0
  %1250 = vmatprep.subr.mxu0 0.0
  %1251 = vmatpush1.msra.mxu0 0.0
  %1252 = vmatprep.subr.mxu0 0.0
  %1253 = vmatpush1.msra.mxu0 0.0
  %1254 = vmatprep.subr.mxu0 0.0
  %1255 = vmatpush1.msra.mxu0 0.0
  %1256 = vmatprep.subr.mxu0 0.0
  %1257 = vmatpush1.msra.mxu0 0.0
  %1258 = vmatprep.subr.mxu0 0.0
  %1259 = vmatpush1.msra.mxu0 0.0
  %1260 = vmatprep.subr.mxu0 0.0
  %1261 = vmatpush1.msra.mxu0 0.0
  %1262 = vmatprep.subr.mxu0 0.0
  %1263 = vmatpush1.msra.mxu0 0.0
  %1264 = vmatprep.subr.mxu0 0.0
  %1265 = vmatpush1.msra.mxu0 0.0
  %1266 = vmatprep.subr.mxu0 0.0
  %1267 = vmatpush1.msra.mxu0 0.0
  %1268 = vmatprep.subr.mxu0 0.0
  %1269 = vmatpush1.msra.mxu0 0.0
  %1270 = vmatprep.subr.mxu0 0.0
  %1271 = vmatpush1.msra.mxu0 0.0
  %1272 = vmatprep.subr.mxu0 0.0
  %1273 = vmatpush1.msra.mxu0 0.0
  %1274 = vmatprep.subr.mxu0 0.0
  %1275 = vmatpush1.msra.mxu0 0.0
  %1276 = vmatprep.subr.mxu0 0.0
  %1277 = vmatpush1.msra.mxu0 0.0
  %1278 = vmatprep.subr.mxu0 0.0
  %1279 = vmatpush1.msra.mxu0 0.0
  %1280 = vmatprep.subr.mxu0 0.0
  %1281 = vmatpush1.msra.mxu0 0.0
  %1282 = vmatprep.subr.mxu0 0.0
  %1283 = vmatpush1.msra.mxu0 0.0
  %1284 = vmatprep.subr.mxu0 0.0
  %1285 = vmatpush1.msra.mxu0 0.0
  %1286 = vmatprep.subr.mxu0 0.0
  %1287 = vmatpush1.msra.mxu0 0.0
  %1288 = vmatprep.subr.mxu0 0.0
  %1289 = vmatpush1.msra.mxu0 0.0
  %1290 = vmatprep.subr.mxu0 0.0
  %1291 = vmatpush1.msra.mxu0 0.0
  %1292 = vmatprep.subr.mxu0 0.0
  %1293 = vmatpush1.msra.mxu0 0.0
  %1294 = vmatprep.subr.mxu0 0.0
  %1295 = vmatpush1.msra.mxu0 0.0
  %1296 = vmatprep.subr.mxu0 0.0
  %1297 = vmatpush1.msra.mxu0 0.0
  %1298 = vmatprep.subr.mxu0 0.0
  %1299 = vmatpush1.msra.mxu0 0.0
  %1300 = vmatprep.subr.mxu0 0.0
  %1301 = vmatpush1.msra.mxu0 0.0
  %1302 = vmatprep.subr.mxu0 0.0
  %1303 = vmatpush1.msra.mxu0 0.0
  %1304 = vmatprep.mubr.f32.mxu0 0.0
  %1305 = vmatmul.mubr.f32.gmra.mrb[0].mxu0 %v1238
  %v1306 = vpop.f32.mrb[0].mxu0
  %v1307 = vadd.f32 0.0, %v1306
  %v1308 = vpop.f32.mrb[0].mxu0
  %1309 = vdwg.mxu0
  %v1310 = vadd.f32 %v295, %v1307
  %v1311 = vxor.u32 %v1310, 2147483648
  %v1312 = vmul.f32 %v1311, 1.442695
  %v1313 = vpow.pop %v1312
  %v1314 = vadd.f32 %v1313, 1.0
  %v1315 = vrcp.pop %v1314
  %v1316 = vmul.f32 1.0, %v1315
  %v1317 = vtanh.pop %v1310
  %v1318 = vmul.f32 %v1316, %v1228
  %1320 = vrot.lane.b32.xlu0 %v1317, 64
  %v1321 = vpop.permute.xlu0 %1320
  %v1323 = vmul.f32 %v1316, %v1321
  %1325 = vrot.lane.b32.xlu0 %v1323, 32
  %v1326 = vpop.permute.xlu0 %1325
  %v1328 = vadd.f32 %v1318, %v1326
  %v1329 = vtanh.pop %v1328
  %1331 = vrot.lane.b32.xlu0 %v1329, 64
  %v1332 = vpop.permute.xlu0 %1331
  %v1334 = vmul.f32 %v1316, %v1332
  %1336 = vrot.lane.b32.xlu0 %v1334, 32
  %v1337 = vpop.permute.xlu0 %1336
  %v1338 = vsel %vm336, %v1337, 0
  %1340 = vmatprep.subr.mxu0 0.0
  %1341 = vmatpush1.msra.mxu0 %v332
  %1342 = vmatprep.subr.mxu0 0.0
  %1343 = vmatpush1.msra.mxu0 %v333
  %1344 = vmatprep.subr.mxu0 0.0
  %1345 = vmatpush1.msra.mxu0 %v334
  %1346 = vmatprep.subr.mxu0 0.0
  %1347 = vmatpush1.msra.mxu0 %v335
  %1348 = vmatprep.subr.mxu0 0.0
  %1349 = vmatpush1.msra.mxu0 0.0
  %1350 = vmatprep.subr.mxu0 0.0
  %1351 = vmatpush1.msra.mxu0 0.0
  %1352 = vmatprep.subr.mxu0 0.0
  %1353 = vmatpush1.msra.mxu0 0.0
  %1354 = vmatprep.subr.mxu0 0.0
  %1355 = vmatpush1.msra.mxu0 0.0
  %1356 = vmatprep.subr.mxu0 0.0
  %1357 = vmatpush1.msra.mxu0 0.0
  %1358 = vmatprep.subr.mxu0 0.0
  %1359 = vmatpush1.msra.mxu0 0.0
  %1360 = vmatprep.subr.mxu0 0.0
  %1361 = vmatpush1.msra.mxu0 0.0
  %1362 = vmatprep.subr.mxu0 0.0
  %1363 = vmatpush1.msra.mxu0 0.0
  %1364 = vmatprep.subr.mxu0 0.0
  %1365 = vmatpush1.msra.mxu0 0.0
  %1366 = vmatprep.subr.mxu0 0.0
  %1367 = vmatpush1.msra.mxu0 0.0
  %1368 = vmatprep.subr.mxu0 0.0
  %1369 = vmatpush1.msra.mxu0 0.0
  %1370 = vmatprep.subr.mxu0 0.0
  %1371 = vmatpush1.msra.mxu0 0.0
  %1372 = vmatprep.subr.mxu0 0.0
  %1373 = vmatpush1.msra.mxu0 0.0
  %1374 = vmatprep.subr.mxu0 0.0
  %1375 = vmatpush1.msra.mxu0 0.0
  %1376 = vmatprep.subr.mxu0 0.0
  %1377 = vmatpush1.msra.mxu0 0.0
  %1378 = vmatprep.subr.mxu0 0.0
  %1379 = vmatpush1.msra.mxu0 0.0
  %1380 = vmatprep.subr.mxu0 0.0
  %1381 = vmatpush1.msra.mxu0 0.0
  %1382 = vmatprep.subr.mxu0 0.0
  %1383 = vmatpush1.msra.mxu0 0.0
  %1384 = vmatprep.subr.mxu0 0.0
  %1385 = vmatpush1.msra.mxu0 0.0
  %1386 = vmatprep.subr.mxu0 0.0
  %1387 = vmatpush1.msra.mxu0 0.0
  %1388 = vmatprep.subr.mxu0 0.0
  %1389 = vmatpush1.msra.mxu0 0.0
  %1390 = vmatprep.subr.mxu0 0.0
  %1391 = vmatpush1.msra.mxu0 0.0
  %1392 = vmatprep.subr.mxu0 0.0
  %1393 = vmatpush1.msra.mxu0 0.0
  %1394 = vmatprep.subr.mxu0 0.0
  %1395 = vmatpush1.msra.mxu0 0.0
  %1396 = vmatprep.subr.mxu0 0.0
  %1397 = vmatpush1.msra.mxu0 0.0
  %1398 = vmatprep.subr.mxu0 0.0
  %1399 = vmatpush1.msra.mxu0 0.0
  %1400 = vmatprep.subr.mxu0 0.0
  %1401 = vmatpush1.msra.mxu0 0.0
  %1402 = vmatprep.subr.mxu0 0.0
  %1403 = vmatpush1.msra.mxu0 0.0
  %1404 = vmatprep.mubr.f32.mxu0 0.0
  %1405 = vmatmul.mubr.f32.gmra.mrb[0].mxu0 %v1338
  %v1406 = vpop.f32.mrb[0].mxu0
  %v1407 = vadd.f32 0.0, %v1406
  %v1408 = vpop.f32.mrb[0].mxu0
  %1409 = vdwg.mxu0
  %v1410 = vadd.f32 %v300, %v1407
  %v1411 = vxor.u32 %v1410, 2147483648
  %v1412 = vmul.f32 %v1411, 1.442695
  %v1413 = vpow.pop %v1412
  %v1414 = vadd.f32 %v1413, 1.0
  %v1415 = vrcp.pop %v1414
  %v1416 = vmul.f32 1.0, %v1415
  %v1417 = vtanh.pop %v1410
  %v1418 = vmul.f32 %v1416, %v1328
  %1420 = vrot.lane.b32.xlu0 %v1417, 64
  %v1421 = vpop.permute.xlu0 %1420
  %v1423 = vmul.f32 %v1416, %v1421
  %1425 = vrot.lane.b32.xlu0 %v1423, 32
  %v1426 = vpop.permute.xlu0 %1425
  %v1428 = vadd.f32 %v1418, %v1426
  %v1429 = vtanh.pop %v1428
  %1431 = vrot.lane.b32.xlu0 %v1429, 64
  %v1432 = vpop.permute.xlu0 %1431
  %v1434 = vmul.f32 %v1416, %v1432
  %1436 = vrot.lane.b32.xlu0 %v1434, 32
  %v1437 = vpop.permute.xlu0 %1436
  %v1438 = vsel %vm336, %v1437, 0
  %1440 = vmatprep.subr.mxu0 0.0
  %1441 = vmatpush1.msra.mxu0 %v332
  %1442 = vmatprep.subr.mxu0 0.0
  %1443 = vmatpush1.msra.mxu0 %v333
  %1444 = vmatprep.subr.mxu0 0.0
  %1445 = vmatpush1.msra.mxu0 %v334
  %1446 = vmatprep.subr.mxu0 0.0
  %1447 = vmatpush1.msra.mxu0 %v335
  %1448 = vmatprep.subr.mxu0 0.0
  %1449 = vmatpush1.msra.mxu0 0.0
  %1450 = vmatprep.subr.mxu0 0.0
  %1451 = vmatpush1.msra.mxu0 0.0
  %1452 = vmatprep.subr.mxu0 0.0
  %1453 = vmatpush1.msra.mxu0 0.0
  %1454 = vmatprep.subr.mxu0 0.0
  %1455 = vmatpush1.msra.mxu0 0.0
  %1456 = vmatprep.subr.mxu0 0.0
  %1457 = vmatpush1.msra.mxu0 0.0
  %1458 = vmatprep.subr.mxu0 0.0
  %1459 = vmatpush1.msra.mxu0 0.0
  %1460 = vmatprep.subr.mxu0 0.0
  %1461 = vmatpush1.msra.mxu0 0.0
  %1462 = vmatprep.subr.mxu0 0.0
  %1463 = vmatpush1.msra.mxu0 0.0
  %1464 = vmatprep.subr.mxu0 0.0
  %1465 = vmatpush1.msra.mxu0 0.0
  %1466 = vmatprep.subr.mxu0 0.0
  %1467 = vmatpush1.msra.mxu0 0.0
  %1468 = vmatprep.subr.mxu0 0.0
  %1469 = vmatpush1.msra.mxu0 0.0
  %1470 = vmatprep.subr.mxu0 0.0
  %1471 = vmatpush1.msra.mxu0 0.0
  %1472 = vmatprep.subr.mxu0 0.0
  %1473 = vmatpush1.msra.mxu0 0.0
  %1474 = vmatprep.subr.mxu0 0.0
  %1475 = vmatpush1.msra.mxu0 0.0
  %1476 = vmatprep.subr.mxu0 0.0
  %1477 = vmatpush1.msra.mxu0 0.0
  %1478 = vmatprep.subr.mxu0 0.0
  %1479 = vmatpush1.msra.mxu0 0.0
  %1480 = vmatprep.subr.mxu0 0.0
  %1481 = vmatpush1.msra.mxu0 0.0
  %1482 = vmatprep.subr.mxu0 0.0
  %1483 = vmatpush1.msra.mxu0 0.0
  %1484 = vmatprep.subr.mxu0 0.0
  %1485 = vmatpush1.msra.mxu0 0.0
  %1486 = vmatprep.subr.mxu0 0.0
  %1487 = vmatpush1.msra.mxu0 0.0
  %1488 = vmatprep.subr.mxu0 0.0
  %1489 = vmatpush1.msra.mxu0 0.0
  %1490 = vmatprep.subr.mxu0 0.0
  %1491 = vmatpush1.msra.mxu0 0.0
  %1492 = vmatprep.subr.mxu0 0.0
  %1493 = vmatpush1.msra.mxu0 0.0
  %1494 = vmatprep.subr.mxu0 0.0
  %1495 = vmatpush1.msra.mxu0 0.0
  %1496 = vmatprep.subr.mxu0 0.0
  %1497 = vmatpush1.msra.mxu0 0.0
  %1498 = vmatprep.subr.mxu0 0.0
  %1499 = vmatpush1.msra.mxu0 0.0
  %1500 = vmatprep.subr.mxu0 0.0
  %1501 = vmatpush1.msra.mxu0 0.0
  %1502 = vmatprep.subr.mxu0 0.0
  %1503 = vmatpush1.msra.mxu0 0.0
  %1504 = vmatprep.mubr.f32.mxu0 0.0
  %1505 = vmatmul.mubr.f32.gmra.mrb[0].mxu0 %v1438
  %v1506 = vpop.f32.mrb[0].mxu0
  %v1507 = vadd.f32 0.0, %v1506
  %v1508 = vpop.f32.mrb[0].mxu0
  %1509 = vdwg.mxu0
  %v1510 = vadd.f32 %v305, %v1507
  %v1511 = vxor.u32 %v1510, 2147483648
  %v1512 = vmul.f32 %v1511, 1.442695
  %v1513 = vpow.pop %v1512
  %v1514 = vadd.f32 %v1513, 1.0
  %v1515 = vrcp.pop %v1514
  %v1516 = vmul.f32 1.0, %v1515
  %v1517 = vtanh.pop %v1510
  %v1518 = vmul.f32 %v1516, %v1428
  %1520 = vrot.lane.b32.xlu0 %v1517, 64
  %v1521 = vpop.permute.xlu0 %1520
  %v1523 = vmul.f32 %v1516, %v1521
  %1525 = vrot.lane.b32.xlu0 %v1523, 32
  %v1526 = vpop.permute.xlu0 %1525
  %v1528 = vadd.f32 %v1518, %v1526
  %v1529 = vtanh.pop %v1528
  %1531 = vrot.lane.b32.xlu0 %v1529, 64
  %v1532 = vpop.permute.xlu0 %1531
  %v1534 = vmul.f32 %v1516, %v1532
  %1536 = vrot.lane.b32.xlu0 %v1534, 32
  %v1537 = vpop.permute.xlu0 %1536
  %v1538 = vsel %vm336, %v1537, 0
  %1540 = vmatprep.subr.mxu0 0.0
  %1541 = vmatpush1.msra.mxu0 %v332
  %1542 = vmatprep.subr.mxu0 0.0
  %1543 = vmatpush1.msra.mxu0 %v333
  %1544 = vmatprep.subr.mxu0 0.0
  %1545 = vmatpush1.msra.mxu0 %v334
  %1546 = vmatprep.subr.mxu0 0.0
  %1547 = vmatpush1.msra.mxu0 %v335
  %1548 = vmatprep.subr.mxu0 0.0
  %1549 = vmatpush1.msra.mxu0 0.0
  %1550 = vmatprep.subr.mxu0 0.0
  %1551 = vmatpush1.msra.mxu0 0.0
  %1552 = vmatprep.subr.mxu0 0.0
  %1553 = vmatpush1.msra.mxu0 0.0
  %1554 = vmatprep.subr.mxu0 0.0
  %1555 = vmatpush1.msra.mxu0 0.0
  %1556 = vmatprep.subr.mxu0 0.0
  %1557 = vmatpush1.msra.mxu0 0.0
  %1558 = vmatprep.subr.mxu0 0.0
  %1559 = vmatpush1.msra.mxu0 0.0
  %1560 = vmatprep.subr.mxu0 0.0
  %1561 = vmatpush1.msra.mxu0 0.0
  %1562 = vmatprep.subr.mxu0 0.0
  %1563 = vmatpush1.msra.mxu0 0.0
  %1564 = vmatprep.subr.mxu0 0.0
  %1565 = vmatpush1.msra.mxu0 0.0
  %1566 = vmatprep.subr.mxu0 0.0
  %1567 = vmatpush1.msra.mxu0 0.0
  %1568 = vmatprep.subr.mxu0 0.0
  %1569 = vmatpush1.msra.mxu0 0.0
  %1570 = vmatprep.subr.mxu0 0.0
  %1571 = vmatpush1.msra.mxu0 0.0
  %1572 = vmatprep.subr.mxu0 0.0
  %1573 = vmatpush1.msra.mxu0 0.0
  %1574 = vmatprep.subr.mxu0 0.0
  %1575 = vmatpush1.msra.mxu0 0.0
  %1576 = vmatprep.subr.mxu0 0.0
  %1577 = vmatpush1.msra.mxu0 0.0
  %1578 = vmatprep.subr.mxu0 0.0
  %1579 = vmatpush1.msra.mxu0 0.0
  %1580 = vmatprep.subr.mxu0 0.0
  %1581 = vmatpush1.msra.mxu0 0.0
  %1582 = vmatprep.subr.mxu0 0.0
  %1583 = vmatpush1.msra.mxu0 0.0
  %1584 = vmatprep.subr.mxu0 0.0
  %1585 = vmatpush1.msra.mxu0 0.0
  %1586 = vmatprep.subr.mxu0 0.0
  %1587 = vmatpush1.msra.mxu0 0.0
  %1588 = vmatprep.subr.mxu0 0.0
  %1589 = vmatpush1.msra.mxu0 0.0
  %1590 = vmatprep.subr.mxu0 0.0
  %1591 = vmatpush1.msra.mxu0 0.0
  %1592 = vmatprep.subr.mxu0 0.0
  %1593 = vmatpush1.msra.mxu0 0.0
  %1594 = vmatprep.subr.mxu0 0.0
  %1595 = vmatpush1.msra.mxu0 0.0
  %1596 = vmatprep.subr.mxu0 0.0
  %1597 = vmatpush1.msra.mxu0 0.0
  %1598 = vmatprep.subr.mxu0 0.0
  %1599 = vmatpush1.msra.mxu0 0.0
  %1600 = vmatprep.subr.mxu0 0.0
  %1601 = vmatpush1.msra.mxu0 0.0
  %1602 = vmatprep.subr.mxu0 0.0
  %1603 = vmatpush1.msra.mxu0 0.0
  %1604 = vmatprep.mubr.f32.mxu0 0.0
  %1605 = vmatmul.mubr.f32.gmra.mrb[0].mxu0 %v1538
  %v1606 = vpop.f32.mrb[0].mxu0
  %v1607 = vadd.f32 0.0, %v1606
  %v1608 = vpop.f32.mrb[0].mxu0
  %1609 = vdwg.mxu0
  %v1610 = vadd.f32 %v310, %v1607
  %v1611 = vxor.u32 %v1610, 2147483648
  %v1612 = vmul.f32 %v1611, 1.442695
  %v1613 = vpow.pop %v1612
  %v1614 = vadd.f32 %v1613, 1.0
  %v1615 = vrcp.pop %v1614
  %v1616 = vmul.f32 1.0, %v1615
  %v1617 = vtanh.pop %v1610
  %v1618 = vmul.f32 %v1616, %v1528
  %1620 = vrot.lane.b32.xlu0 %v1617, 64
  %v1621 = vpop.permute.xlu0 %1620
  %v1623 = vmul.f32 %v1616, %v1621
  %1625 = vrot.lane.b32.xlu0 %v1623, 32
  %v1626 = vpop.permute.xlu0 %1625
  %v1628 = vadd.f32 %v1618, %v1626
  %v1629 = vtanh.pop %v1628
  %1631 = vrot.lane.b32.xlu0 %v1629, 64
  %v1632 = vpop.permute.xlu0 %1631
  %v1634 = vmul.f32 %v1616, %v1632
  %1636 = vrot.lane.b32.xlu0 %v1634, 32
  %v1637 = vpop.permute.xlu0 %1636
  %v1638 = vsel %vm336, %v1637, 0
  %1640 = vmatprep.subr.mxu0 0.0
  %1641 = vmatpush1.msra.mxu0 %v332
  %1642 = vmatprep.subr.mxu0 0.0
  %1643 = vmatpush1.msra.mxu0 %v333
  %1644 = vmatprep.subr.mxu0 0.0
  %1645 = vmatpush1.msra.mxu0 %v334
  %1646 = vmatprep.subr.mxu0 0.0
  %1647 = vmatpush1.msra.mxu0 %v335
  %1648 = vmatprep.subr.mxu0 0.0
  %1649 = vmatpush1.msra.mxu0 0.0
  %1650 = vmatprep.subr.mxu0 0.0
  %1651 = vmatpush1.msra.mxu0 0.0
  %1652 = vmatprep.subr.mxu0 0.0
  %1653 = vmatpush1.msra.mxu0 0.0
  %1654 = vmatprep.subr.mxu0 0.0
  %1655 = vmatpush1.msra.mxu0 0.0
  %1656 = vmatprep.subr.mxu0 0.0
  %1657 = vmatpush1.msra.mxu0 0.0
  %1658 = vmatprep.subr.mxu0 0.0
  %1659 = vmatpush1.msra.mxu0 0.0
  %1660 = vmatprep.subr.mxu0 0.0
  %1661 = vmatpush1.msra.mxu0 0.0
  %1662 = vmatprep.subr.mxu0 0.0
  %1663 = vmatpush1.msra.mxu0 0.0
  %1664 = vmatprep.subr.mxu0 0.0
  %1665 = vmatpush1.msra.mxu0 0.0
  %1666 = vmatprep.subr.mxu0 0.0
  %1667 = vmatpush1.msra.mxu0 0.0
  %1668 = vmatprep.subr.mxu0 0.0
  %1669 = vmatpush1.msra.mxu0 0.0
  %1670 = vmatprep.subr.mxu0 0.0
  %1671 = vmatpush1.msra.mxu0 0.0
  %1672 = vmatprep.subr.mxu0 0.0
  %1673 = vmatpush1.msra.mxu0 0.0
  %1674 = vmatprep.subr.mxu0 0.0
  %1675 = vmatpush1.msra.mxu0 0.0
  %1676 = vmatprep.subr.mxu0 0.0
  %1677 = vmatpush1.msra.mxu0 0.0
  %1678 = vmatprep.subr.mxu0 0.0
  %1679 = vmatpush1.msra.mxu0 0.0
  %1680 = vmatprep.subr.mxu0 0.0
  %1681 = vmatpush1.msra.mxu0 0.0
  %1682 = vmatprep.subr.mxu0 0.0
  %1683 = vmatpush1.msra.mxu0 0.0
  %1684 = vmatprep.subr.mxu0 0.0
  %1685 = vmatpush1.msra.mxu0 0.0
  %1686 = vmatprep.subr.mxu0 0.0
  %1687 = vmatpush1.msra.mxu0 0.0
  %1688 = vmatprep.subr.mxu0 0.0
  %1689 = vmatpush1.msra.mxu0 0.0
  %1690 = vmatprep.subr.mxu0 0.0
  %1691 = vmatpush1.msra.mxu0 0.0
  %1692 = vmatprep.subr.mxu0 0.0
  %1693 = vmatpush1.msra.mxu0 0.0
  %1694 = vmatprep.subr.mxu0 0.0
  %1695 = vmatpush1.msra.mxu0 0.0
  %1696 = vmatprep.subr.mxu0 0.0
  %1697 = vmatpush1.msra.mxu0 0.0
  %1698 = vmatprep.subr.mxu0 0.0
  %1699 = vmatpush1.msra.mxu0 0.0
  %1700 = vmatprep.subr.mxu0 0.0
  %1701 = vmatpush1.msra.mxu0 0.0
  %1702 = vmatprep.subr.mxu0 0.0
  %1703 = vmatpush1.msra.mxu0 0.0
  %1704 = vmatprep.mubr.f32.mxu0 0.0
  %1705 = vmatmul.mubr.f32.gmra.mrb[0].mxu0 %v1638
  %v1706 = vpop.f32.mrb[0].mxu0
  %v1707 = vadd.f32 0.0, %v1706
  %v1708 = vpop.f32.mrb[0].mxu0
  %1709 = vdwg.mxu0
  %v1710 = vadd.f32 %v315, %v1707
  %v1711 = vxor.u32 %v1710, 2147483648
  %v1712 = vmul.f32 %v1711, 1.442695
  %v1713 = vpow.pop %v1712
  %v1714 = vadd.f32 %v1713, 1.0
  %v1715 = vrcp.pop %v1714
  %v1716 = vmul.f32 1.0, %v1715
  %v1717 = vtanh.pop %v1710
  %v1718 = vmul.f32 %v1716, %v1628
  %1720 = vrot.lane.b32.xlu0 %v1717, 64
  %v1721 = vpop.permute.xlu0 %1720
  %v1723 = vmul.f32 %v1716, %v1721
  %1725 = vrot.lane.b32.xlu0 %v1723, 32
  %v1726 = vpop.permute.xlu0 %1725
  %v1728 = vadd.f32 %v1718, %v1726
  %v1729 = vtanh.pop %v1728
  %1731 = vrot.lane.b32.xlu0 %v1729, 64
  %v1732 = vpop.permute.xlu0 %1731
  %v1734 = vmul.f32 %v1716, %v1732
  %1736 = vrot.lane.b32.xlu0 %v1734, 32
  %v1737 = vpop.permute.xlu0 %1736
  %v1738 = vsel %vm336, %v1737, 0
  %1740 = vmatprep.subr.mxu0 0.0
  %1741 = vmatpush1.msra.mxu0 %v332
  %1742 = vmatprep.subr.mxu0 0.0
  %1743 = vmatpush1.msra.mxu0 %v333
  %1744 = vmatprep.subr.mxu0 0.0
  %1745 = vmatpush1.msra.mxu0 %v334
  %1746 = vmatprep.subr.mxu0 0.0
  %1747 = vmatpush1.msra.mxu0 %v335
  %1748 = vmatprep.subr.mxu0 0.0
  %1749 = vmatpush1.msra.mxu0 0.0
  %1750 = vmatprep.subr.mxu0 0.0
  %1751 = vmatpush1.msra.mxu0 0.0
  %1752 = vmatprep.subr.mxu0 0.0
  %1753 = vmatpush1.msra.mxu0 0.0
  %1754 = vmatprep.subr.mxu0 0.0
  %1755 = vmatpush1.msra.mxu0 0.0
  %1756 = vmatprep.subr.mxu0 0.0
  %1757 = vmatpush1.msra.mxu0 0.0
  %1758 = vmatprep.subr.mxu0 0.0
  %1759 = vmatpush1.msra.mxu0 0.0
  %1760 = vmatprep.subr.mxu0 0.0
  %1761 = vmatpush1.msra.mxu0 0.0
  %1762 = vmatprep.subr.mxu0 0.0
  %1763 = vmatpush1.msra.mxu0 0.0
  %1764 = vmatprep.subr.mxu0 0.0
  %1765 = vmatpush1.msra.mxu0 0.0
  %1766 = vmatprep.subr.mxu0 0.0
  %1767 = vmatpush1.msra.mxu0 0.0
  %1768 = vmatprep.subr.mxu0 0.0
  %1769 = vmatpush1.msra.mxu0 0.0
  %1770 = vmatprep.subr.mxu0 0.0
  %1771 = vmatpush1.msra.mxu0 0.0
  %1772 = vmatprep.subr.mxu0 0.0
  %1773 = vmatpush1.msra.mxu0 0.0
  %1774 = vmatprep.subr.mxu0 0.0
  %1775 = vmatpush1.msra.mxu0 0.0
  %1776 = vmatprep.subr.mxu0 0.0
  %1777 = vmatpush1.msra.mxu0 0.0
  %1778 = vmatprep.subr.mxu0 0.0
  %1779 = vmatpush1.msra.mxu0 0.0
  %1780 = vmatprep.subr.mxu0 0.0
  %1781 = vmatpush1.msra.mxu0 0.0
  %1782 = vmatprep.subr.mxu0 0.0
  %1783 = vmatpush1.msra.mxu0 0.0
  %1784 = vmatprep.subr.mxu0 0.0
  %1785 = vmatpush1.msra.mxu0 0.0
  %1786 = vmatprep.subr.mxu0 0.0
  %1787 = vmatpush1.msra.mxu0 0.0
  %1788 = vmatprep.subr.mxu0 0.0
  %1789 = vmatpush1.msra.mxu0 0.0
  %1790 = vmatprep.subr.mxu0 0.0
  %1791 = vmatpush1.msra.mxu0 0.0
  %1792 = vmatprep.subr.mxu0 0.0
  %1793 = vmatpush1.msra.mxu0 0.0
  %1794 = vmatprep.subr.mxu0 0.0
  %1795 = vmatpush1.msra.mxu0 0.0
  %1796 = vmatprep.subr.mxu0 0.0
  %1797 = vmatpush1.msra.mxu0 0.0
  %1798 = vmatprep.subr.mxu0 0.0
  %1799 = vmatpush1.msra.mxu0 0.0
  %1800 = vmatprep.subr.mxu0 0.0
  %1801 = vmatpush1.msra.mxu0 0.0
  %1802 = vmatprep.subr.mxu0 0.0
  %1803 = vmatpush1.msra.mxu0 0.0
  %1804 = vmatprep.mubr.f32.mxu0 0.0
  %1805 = vmatmul.mubr.f32.gmra.mrb[0].mxu0 %v1738
  %v1806 = vpop.f32.mrb[0].mxu0
  %v1807 = vadd.f32 0.0, %v1806
  %v1808 = vpop.f32.mrb[0].mxu0
  %1809 = vdwg.mxu0
  %v1810 = vadd.f32 %v320, %v1807
  %v1811 = vxor.u32 %v1810, 2147483648
  %v1812 = vmul.f32 %v1811, 1.442695
  %v1813 = vpow.pop %v1812
  %v1814 = vadd.f32 %v1813, 1.0
  %v1815 = vrcp.pop %v1814
  %v1816 = vmul.f32 1.0, %v1815
  %v1817 = vtanh.pop %v1810
  %v1818 = vmul.f32 %v1816, %v1728
  %1820 = vrot.lane.b32.xlu0 %v1817, 64
  %v1821 = vpop.permute.xlu0 %1820
  %v1823 = vmul.f32 %v1816, %v1821
  %1825 = vrot.lane.b32.xlu0 %v1823, 32
  %v1826 = vpop.permute.xlu0 %1825
  %v1828 = vadd.f32 %v1818, %v1826
  %v1829 = vtanh.pop %v1828
  %1831 = vrot.lane.b32.xlu0 %v1829, 64
  %v1832 = vpop.permute.xlu0 %1831
  %v1834 = vmul.f32 %v1816, %v1832
  %1836 = vrot.lane.b32.xlu0 %v1834, 32
  %v1837 = vpop.permute.xlu0 %1836
  %v1838 = vsel %vm336, %v1837, 0
  %1840 = vmatprep.subr.mxu0 0.0
  %1841 = vmatpush1.msra.mxu0 %v332
  %1842 = vmatprep.subr.mxu0 0.0
  %1843 = vmatpush1.msra.mxu0 %v333
  %1844 = vmatprep.subr.mxu0 0.0
  %1845 = vmatpush1.msra.mxu0 %v334
  %1846 = vmatprep.subr.mxu0 0.0
  %1847 = vmatpush1.msra.mxu0 %v335
  %1848 = vmatprep.subr.mxu0 0.0
  %1849 = vmatpush1.msra.mxu0 0.0
  %1850 = vmatprep.subr.mxu0 0.0
  %1851 = vmatpush1.msra.mxu0 0.0
  %1852 = vmatprep.subr.mxu0 0.0
  %1853 = vmatpush1.msra.mxu0 0.0
  %1854 = vmatprep.subr.mxu0 0.0
  %1855 = vmatpush1.msra.mxu0 0.0
  %1856 = vmatprep.subr.mxu0 0.0
  %1857 = vmatpush1.msra.mxu0 0.0
  %1858 = vmatprep.subr.mxu0 0.0
  %1859 = vmatpush1.msra.mxu0 0.0
  %1860 = vmatprep.subr.mxu0 0.0
  %1861 = vmatpush1.msra.mxu0 0.0
  %1862 = vmatprep.subr.mxu0 0.0
  %1863 = vmatpush1.msra.mxu0 0.0
  %1864 = vmatprep.subr.mxu0 0.0
  %1865 = vmatpush1.msra.mxu0 0.0
  %1866 = vmatprep.subr.mxu0 0.0
  %1867 = vmatpush1.msra.mxu0 0.0
  %1868 = vmatprep.subr.mxu0 0.0
  %1869 = vmatpush1.msra.mxu0 0.0
  %1870 = vmatprep.subr.mxu0 0.0
  %1871 = vmatpush1.msra.mxu0 0.0
  %1872 = vmatprep.subr.mxu0 0.0
  %1873 = vmatpush1.msra.mxu0 0.0
  %1874 = vmatprep.subr.mxu0 0.0
  %1875 = vmatpush1.msra.mxu0 0.0
  %1876 = vmatprep.subr.mxu0 0.0
  %1877 = vmatpush1.msra.mxu0 0.0
  %1878 = vmatprep.subr.mxu0 0.0
  %1879 = vmatpush1.msra.mxu0 0.0
  %1880 = vmatprep.subr.mxu0 0.0
  %1881 = vmatpush1.msra.mxu0 0.0
  %1882 = vmatprep.subr.mxu0 0.0
  %1883 = vmatpush1.msra.mxu0 0.0
  %1884 = vmatprep.subr.mxu0 0.0
  %1885 = vmatpush1.msra.mxu0 0.0
  %1886 = vmatprep.subr.mxu0 0.0
  %1887 = vmatpush1.msra.mxu0 0.0
  %1888 = vmatprep.subr.mxu0 0.0
  %1889 = vmatpush1.msra.mxu0 0.0
  %1890 = vmatprep.subr.mxu0 0.0
  %1891 = vmatpush1.msra.mxu0 0.0
  %1892 = vmatprep.subr.mxu0 0.0
  %1893 = vmatpush1.msra.mxu0 0.0
  %1894 = vmatprep.subr.mxu0 0.0
  %1895 = vmatpush1.msra.mxu0 0.0
  %1896 = vmatprep.subr.mxu0 0.0
  %1897 = vmatpush1.msra.mxu0 0.0
  %1898 = vmatprep.subr.mxu0 0.0
  %1899 = vmatpush1.msra.mxu0 0.0
  %1900 = vmatprep.subr.mxu0 0.0
  %1901 = vmatpush1.msra.mxu0 0.0
  %1902 = vmatprep.subr.mxu0 0.0
  %1903 = vmatpush1.msra.mxu0 0.0
  %1904 = vmatprep.mubr.f32.mxu0 0.0
  %1905 = vmatmul.mubr.f32.gmra.mrb[0].mxu0 %v1838
  %v1906 = vpop.f32.mrb[0].mxu0
  %v1907 = vadd.f32 0.0, %v1906
  %v1908 = vpop.f32.mrb[0].mxu0
  %1909 = vdwg.mxu0
  %v1910 = vadd.f32 %v325, %v1907
  %v1911 = vxor.u32 %v1910, 2147483648
  %v1912 = vmul.f32 %v1911, 1.442695
  %v1913 = vpow.pop %v1912
  %v1914 = vadd.f32 %v1913, 1.0
  %v1915 = vrcp.pop %v1914
  %v1916 = vmul.f32 1.0, %v1915
  %v1917 = vtanh.pop %v1910
  %v1918 = vmul.f32 %v1916, %v1828
  %1920 = vrot.lane.b32.xlu0 %v1917, 64
  %v1921 = vpop.permute.xlu0 %1920
  %v1923 = vmul.f32 %v1916, %v1921
  %1925 = vrot.lane.b32.xlu0 %v1923, 32
  %v1926 = vpop.permute.xlu0 %1925
  %v1928 = vadd.f32 %v1918, %v1926
  %v1929 = vtanh.pop %v1928
  %1931 = vrot.lane.b32.xlu0 %v1929, 64
  %v1932 = vpop.permute.xlu0 %1931
  %v1934 = vmul.f32 %v1916, %v1932
  %v1935 = vld [vmem:[%s8] sm:$0xff]
  %v1936 = vld [vmem:[%s8 + $0x8] sm:$0xff]
  %v1937 = vld [vmem:[%s8 + $0x10] sm:$0xff]
  %v1938 = vld [vmem:[%s8 + $0x18] sm:$0xff]
  %v1939 = vld [vmem:[%s9] sm:$0x1]
  %v1941 = vlaneseq
  %v1942 = vshrl.u32 %v1941, 7
  %v1943 = vsub.s32 0, %v1942
  %v1944 = vrot.slane %v1939, %v1943
  %1947 = vrot.lane.b32.xlu0 %v1934, 32
  %v1948 = vpop.permute.xlu0 %1947
  %v1949 = vsel %vm336, %v1948, 0
  %1951 = vmatprep.subr.mxu0 0.0
  %1952 = vmatpush1.msra.mxu0 %v1935
  %1953 = vmatprep.subr.mxu0 0.0
  %1954 = vmatpush1.msra.mxu0 %v1936
  %1955 = vmatprep.subr.mxu0 0.0
  %1956 = vmatpush1.msra.mxu0 %v1937
  %1957 = vmatprep.subr.mxu0 0.0
  %1958 = vmatpush1.msra.mxu0 %v1938
  %1959 = vmatprep.subr.mxu0 0.0
  %1960 = vmatpush1.msra.mxu0 0.0
  %1961 = vmatprep.subr.mxu0 0.0
  %1962 = vmatpush1.msra.mxu0 0.0
  %1963 = vmatprep.subr.mxu0 0.0
  %1964 = vmatpush1.msra.mxu0 0.0
  %1965 = vmatprep.subr.mxu0 0.0
  %1966 = vmatpush1.msra.mxu0 0.0
  %1967 = vmatprep.subr.mxu0 0.0
  %1968 = vmatpush1.msra.mxu0 0.0
  %1969 = vmatprep.subr.mxu0 0.0
  %1970 = vmatpush1.msra.mxu0 0.0
  %1971 = vmatprep.subr.mxu0 0.0
  %1972 = vmatpush1.msra.mxu0 0.0
  %1973 = vmatprep.subr.mxu0 0.0
  %1974 = vmatpush1.msra.mxu0 0.0
  %1975 = vmatprep.subr.mxu0 0.0
  %1976 = vmatpush1.msra.mxu0 0.0
  %1977 = vmatprep.subr.mxu0 0.0
  %1978 = vmatpush1.msra.mxu0 0.0
  %1979 = vmatprep.subr.mxu0 0.0
  %1980 = vmatpush1.msra.mxu0 0.0
  %1981 = vmatprep.subr.mxu0 0.0
  %1982 = vmatpush1.msra.mxu0 0.0
  %1983 = vmatprep.subr.mxu0 0.0
  %1984 = vmatpush1.msra.mxu0 0.0
  %1985 = vmatprep.subr.mxu0 0.0
  %1986 = vmatpush1.msra.mxu0 0.0
  %1987 = vmatprep.subr.mxu0 0.0
  %1988 = vmatpush1.msra.mxu0 0.0
  %1989 = vmatprep.subr.mxu0 0.0
  %1990 = vmatpush1.msra.mxu0 0.0
  %1991 = vmatprep.subr.mxu0 0.0
  %1992 = vmatpush1.msra.mxu0 0.0
  %1993 = vmatprep.subr.mxu0 0.0
  %1994 = vmatpush1.msra.mxu0 0.0
  %1995 = vmatprep.subr.mxu0 0.0
  %1996 = vmatpush1.msra.mxu0 0.0
  %1997 = vmatprep.subr.mxu0 0.0
  %1998 = vmatpush1.msra.mxu0 0.0
  %1999 = vmatprep.subr.mxu0 0.0
  %2000 = vmatpush1.msra.mxu0 0.0
  %2001 = vmatprep.subr.mxu0 0.0
  %2002 = vmatpush1.msra.mxu0 0.0
  %2003 = vmatprep.subr.mxu0 0.0
  %2004 = vmatpush1.msra.mxu0 0.0
  %2005 = vmatprep.subr.mxu0 0.0
  %2006 = vmatpush1.msra.mxu0 0.0
  %2007 = vmatprep.subr.mxu0 0.0
  %2008 = vmatpush1.msra.mxu0 0.0
  %2009 = vmatprep.subr.mxu0 0.0
  %2010 = vmatpush1.msra.mxu0 0.0
  %2011 = vmatprep.subr.mxu0 0.0
  %2012 = vmatpush1.msra.mxu0 0.0
  %2013 = vmatprep.subr.mxu0 0.0
  %2014 = vmatpush1.msra.mxu0 0.0
  %2015 = vmatprep.mubr.f32.mxu0 0.0
  %2016 = vmatmul.mubr.f32.gmra.mrb[0].mxu0 %v1238
  %v2017 = vpop.f32.mrb[0].mxu0
  %v2018 = vadd.f32 %v1944, %v2017
  %v2019 = vpop.f32.mrb[0].mxu0
  %2020 = vmatprep.mubr.f32.mxu0 0.0
  %2021 = vmatmul.mubr.f32.gmra.mrb[0].mxu0 %v1338
  %v2022 = vpop.f32.mrb[0].mxu0
  %v2023 = vadd.f32 %v1944, %v2022
  %v2024 = vpop.f32.mrb[0].mxu0
  %2025 = vmatprep.mubr.f32.mxu0 0.0
  %2026 = vmatmul.mubr.f32.gmra.mrb[0].mxu0 %v1438
  %v2027 = vpop.f32.mrb[0].mxu0
  %v2028 = vadd.f32 %v1944, %v2027
  %v2029 = vpop.f32.mrb[0].mxu0
  %2030 = vmatprep.mubr.f32.mxu0 0.0
  %2031 = vmatmul.mubr.f32.gmra.mrb[0].mxu0 %v1538
  %v2032 = vpop.f32.mrb[0].mxu0
  %v2033 = vadd.f32 %v1944, %v2032
  %v2034 = vpop.f32.mrb[0].mxu0
  %2035 = vmatprep.mubr.f32.mxu0 0.0
  %2036 = vmatmul.mubr.f32.gmra.mrb[0].mxu0 %v1638
  %v2037 = vpop.f32.mrb[0].mxu0
  %v2038 = vadd.f32 %v1944, %v2037
  %v2039 = vpop.f32.mrb[0].mxu0
  %2040 = vmatprep.mubr.f32.mxu0 0.0
  %2041 = vmatmul.mubr.f32.gmra.mrb[0].mxu0 %v1738
  %v2042 = vpop.f32.mrb[0].mxu0
  %v2043 = vadd.f32 %v1944, %v2042
  %v2044 = vpop.f32.mrb[0].mxu0
  %2045 = vmatprep.mubr.f32.mxu0 0.0
  %2046 = vmatmul.mubr.f32.gmra.mrb[0].mxu0 %v1838
  %v2047 = vpop.f32.mrb[0].mxu0
  %v2048 = vadd.f32 %v1944, %v2047
  %v2049 = vpop.f32.mrb[0].mxu0
  %2050 = vmatprep.mubr.f32.mxu0 0.0
  %2051 = vmatmul.mubr.f32.gmra.mrb[0].mxu0 %v1949
  %v2052 = vpop.f32.mrb[0].mxu0
  %v2053 = vadd.f32 %v1944, %v2052
  %v2054 = vpop.f32.mrb[0].mxu0
  %2055 = vdwg.mxu0
  %2056 = vst.msk [vmem:[%s10] sm:$0xff] %vm52, %v2018
  %2057 = vst.msk [vmem:[%s10 + $0x8] sm:$0xff] %vm52, %v2023
  %2058 = vst.msk [vmem:[%s10 + $0x10] sm:$0xff] %vm52, %v2028
  %2059 = vst.msk [vmem:[%s10 + $0x18] sm:$0xff] %vm52, %v2033
  %2060 = vst.msk [vmem:[%s10 + $0x20] sm:$0xff] %vm52, %v2038
  %2061 = vst.msk [vmem:[%s10 + $0x28] sm:$0xff] %vm52, %v2043
  %2062 = vst.msk [vmem:[%s10 + $0x30] sm:$0xff] %vm52, %v2048
  %2063 = vst.msk [vmem:[%s10 + $0x38] sm:$0xff] %vm52, %v2053
  // Predicated region
  $region42: #{coupler_forward.1} parent=0 // pred_check
    _
  $region43: #{coupler_forward.1} parent=0 // pred_check_branch
    %2065 = sbr.rel (0) target = $region45
  $region44: #{coupler_forward.1} parent=0 // pred_region
    _
  $region45: #{coupler_forward.1} parent=0 // pred_fallthru
    _
  // Predicated region
  $region46: #{coupler_forward.1} parent=0 // pred_check
    _
  $region47: #{coupler_forward.1} parent=0 // pred_check_branch
    %2067 = sbr.rel (0) target = $region49
  $region48: #{coupler_forward.1} parent=0 // pred_region
    _
  $region49: #{coupler_forward.1} parent=0 // pred_fallthru
    _

</llo_original>
